<compile_context>
chip_gen: v6e
topology: v6e:2x2x1
jax: 0.10.0
libtpu: 0.0.40
codegen_flags: <defaults>
</compile_context>

<pallas_src>
import jax
import jax.numpy as jnp
from jax.experimental import pallas as pl
from jax.experimental.pallas import tpu as pltpu

# ---------------- small synthetic hyper-parameters ----------------
B = 2
T = 16                    # phone / text length
N_MELS = 8
DEC = 32                  # decoder_dims (== attention dim == 2 x encoder dims)
LSTM = 32                 # lstm_dims
SPK = 8                   # speaker_dims
NOISE = 4                 # noise_dims
PRE_FC1 = 256             # PreNet fc1 (torch default)
PRE_FC2 = DEC // 2        # PreNet fc2
ENC2 = DEC                # encoder_seq last dim (2 x Encoder)
K_ATTN = 31               # LSA conv kernel size (torch default)
F_ATTN = 32               # LSA conv filters (torch default)
PAD = (K_ATTN - 1) // 2
MAX_R = 10
R = 3                     # self.r

# ---------------- state slab layout [B, STATE_W] ----------------
OFF_ATTN = 0
OFF_H1 = OFF_ATTN + DEC
OFF_H2 = OFF_H1 + LSTM
OFF_C1 = OFF_H2 + LSTM
OFF_C2 = OFF_C1 + LSTM
OFF_CTX = OFF_C2 + LSTM
OFF_CUM = OFF_CTX + ENC2
OFF_MASK = OFF_CUM + T
STATE_W = OFF_MASK + T                         # 224 lanes

# ---------------- per-step slab layout [B, STEP_W] ----------------
STEP_W = N_MELS + NOISE + SPK                  # 20 lanes: prenet_in | noise | speaker

# ---------------- output slab layout [B, OUT_W] ----------------
OFF_MELS_OUT = STATE_W                         # 224
OFF_SCORES_OUT = OFF_MELS_OUT + N_MELS * MAX_R # 304
OUT_W = 384                                    # padded to 3 x 128 lanes (unmasked stores)

# ---------------- fused-layer input widths ----------------
GRU_IN = ENC2 + PRE_FC2 + SPK + DEC            # 88
RI_IN = ENC2 + DEC + SPK + NOISE               # 76

# ---------------- weight-slab row offsets (8-aligned) ----------------
R_GRU = 0          # [89, 128]
R_L1 = 96          # [65, 128]
R_L2 = 168         # [65, 128]
R_RI = 240         # [77,  32]
R_MEL = 320        # [32,  80]
R_P2 = 352         # [257, 16]
W128_ROWS = 616

R512_TOEP = 0      # [17, 512]
R512_Q = 24        # [33, 512]
R512_P1 = 64       # [13, 256]  (PreNet fc1, folded into the 512-lane slab)
W512_ROWS = 80


def _decoder_kernel(enc_seq_ref, enc_proj_ref, state_ref, step_ref,
                    w128_ref, w512_ref, vsel_ref, out_ref):
    f32 = jnp.float32
    ones = jnp.ones((B, 1), f32)

    def dot(a, b):
        return jnp.dot(a, b, preferred_element_type=f32)

    # ---- unpack the state slab ----
    st = state_ref[...]
    attn_h = st[:, OFF_ATTN:OFF_ATTN + DEC]
    h1 = st[:, OFF_H1:OFF_H1 + LSTM]
    h2 = st[:, OFF_H2:OFF_H2 + LSTM]
    c1 = st[:, OFF_C1:OFF_C1 + LSTM]
    c2 = st[:, OFF_C2:OFF_C2 + LSTM]
    ctx = st[:, OFF_CTX:OFF_CTX + ENC2]
    cum = st[:, OFF_CUM:OFF_CUM + T]
    mask = st[:, OFF_MASK:OFF_MASK + T]

    stp = step_ref[...]
    prenet_noise = stp[:, 0:N_MELS + NOISE]                 # contiguous [prenet_in | noise]
    noise_spk = stp[:, N_MELS:STEP_W]                       # contiguous [noise | speaker]
    spk = stp[:, N_MELS + NOISE:STEP_W]

    # ---- PreNet: fc1 -> relu -> fc2 -> relu (eval mode: no dropout) ----
    p1 = jnp.maximum(dot(jnp.concatenate([prenet_noise, ones], axis=-1),
                         w512_ref[R512_P1:R512_P1 + N_MELS + NOISE + 1, 0:PRE_FC1]),
                     0.0)                                                     # [B, 256]
    prenet_out = jnp.maximum(dot(jnp.concatenate([p1, ones], axis=-1),
                                 w128_ref[R_P2:R_P2 + PRE_FC1 + 1, 0:PRE_FC2]),
                             0.0)                                             # [B, 16]

    # ---- attention GRUCell (PyTorch gate order r,z,n; n-gate hidden part kept separate) ----
    g = dot(jnp.concatenate([ctx, prenet_out, spk, attn_h, ones], axis=-1),
            w128_ref[R_GRU:R_GRU + GRU_IN + 1, :])                            # [B, 128]
    r = jax.nn.sigmoid(g[:, 0:DEC])
    z = jax.nn.sigmoid(g[:, DEC:2 * DEC])
    n = jnp.tanh(g[:, 2 * DEC:3 * DEC] + r * g[:, 3 * DEC:4 * DEC])
    attn_h_new = (1.0 - z) * n + z * attn_h                                   # [B, DEC]

    # ---- LSA attention, flat [B, T*DEC] layout ----
    # location conv + lsa_L folded into one Toeplitz matmul (bias row via ones-column)
    ploc = dot(jnp.concatenate([cum, ones], axis=-1),
               w512_ref[R512_TOEP:R512_TOEP + T + 1, :])                      # [B, T*DEC]
    # query projection pre-tiled across T so the broadcast is free in flat layout
    procq = dot(jnp.concatenate([attn_h_new, ones], axis=-1),
                w512_ref[R512_Q:R512_Q + DEC + 1, :])                         # [B, T*DEC]
    tanh_flat = jnp.tanh(ploc + procq + enc_proj_ref[...])                    # [B, T*DEC]
    u = dot(tanh_flat, vsel_ref[...])                                         # [B, T] (MXU v-reduce)

    # mask padded phone positions, softmax over T
    u = jnp.where(mask > 0.5, u, -1e30)
    ex = jnp.exp(u - jnp.max(u, axis=-1, keepdims=True)) * mask
    scores = ex / jnp.sum(ex, axis=-1, keepdims=True)                         # [B, T]

    cum_new = cum + scores                                                    # LSA internal state
    ctx_new = jnp.sum(scores[:, :, None] * enc_seq_ref[...], axis=1)          # [B, ENC2]

    # ---- rnn_input linear; weight rows packed host-side as (ctx|attn|noise|spk|bias) ----
    x = dot(jnp.concatenate([ctx_new, attn_h_new, noise_spk, ones], axis=-1),
            w128_ref[R_RI:R_RI + RI_IN + 1, 0:LSTM])                          # [B, LSTM]

    # ---- two residual LSTMCells (gate order i,f,g,o; eval mode: no zoneout) ----
    def lstm(xin, h, c, row):
        gg = dot(jnp.concatenate([xin, h, ones], axis=-1),
                 w128_ref[row:row + 2 * LSTM + 1, :])                         # [B, 4*LSTM]
        i = jax.nn.sigmoid(gg[:, 0:LSTM])
        f = jax.nn.sigmoid(gg[:, LSTM:2 * LSTM])
        cc = jnp.tanh(gg[:, 2 * LSTM:3 * LSTM])
        o = jax.nn.sigmoid(gg[:, 3 * LSTM:4 * LSTM])
        c_new = f * c + i * cc
        return o * jnp.tanh(c_new), c_new

    h1n, c1n = lstm(x, h1, c1, R_L1)
    x = x + h1n
    h2n, c2n = lstm(x, h2, c2, R_L2)
    x = x + h2n

    mels = dot(x, w128_ref[R_MEL:R_MEL + LSTM, 0:N_MELS * MAX_R])             # [B, 80]

    # ---- single lane-dense output slab store ----
    out_ref[...] = jnp.concatenate(
        [attn_h_new, h1n, h2n, c1n, c2n, ctx_new, cum_new, mask,              # state' (224)
         mels, scores,                                                        # 80 + 16
         jnp.zeros((B, OUT_W - OFF_SCORES_OUT - T), f32)], axis=-1)


def decoder_step(enc_seq, enc_proj_flat, state, step, w128, w512, vsel):
    """Everything fits VMEM -> no grid; 7 consolidated inputs, 1 packed output."""
    vmem = pl.BlockSpec(memory_space=pltpu.MemorySpace.VMEM)
    return pl.pallas_call(
        _decoder_kernel,
        out_shape=jax.ShapeDtypeStruct((B, OUT_W), jnp.float32),
        in_specs=[vmem] * 7,
        out_specs=vmem,
    )(enc_seq, enc_proj_flat, state, step, w128, w512, vsel)


# ---------------- host-side parameter construction & packing ----------------
def init_params(key):
    def nrm(k, shape, scale=0.1):
        return (scale * jax.random.normal(k, shape)).astype(jnp.float32)

    shapes = {
        "pre_w1_mel": (N_MELS, PRE_FC1), "pre_w1_noise": (NOISE, PRE_FC1), "pre_b1": (1, PRE_FC1),
        "pre_w2": (PRE_FC1, PRE_FC2), "pre_b2": (1, PRE_FC2),
        "gru_wih_ctx": (ENC2, 3 * DEC), "gru_wih_pre": (PRE_FC2, 3 * DEC), "gru_wih_spk": (SPK, 3 * DEC),
        "gru_whh": (DEC, 3 * DEC), "gru_bih": (1, 3 * DEC), "gru_bhh": (1, 3 * DEC),
        "conv_w": (K_ATTN, F_ATTN), "conv_b": (1, F_ATTN),
        "lsa_L": (F_ATTN, DEC), "lsa_W": (DEC, DEC), "lsa_Wb": (1, DEC), "lsa_v": (1, DEC),
        "ri_w_ctx": (ENC2, LSTM), "ri_w_attn": (DEC, LSTM), "ri_w_spk": (SPK, LSTM),
        "ri_w_noise": (NOISE, LSTM), "ri_b": (1, LSTM),
        "l1_wih": (LSTM, 4 * LSTM), "l1_whh": (LSTM, 4 * LSTM), "l1_bih": (1, 4 * LSTM), "l1_bhh": (1, 4 * LSTM),
        "l2_wih": (LSTM, 4 * LSTM), "l2_whh": (LSTM, 4 * LSTM), "l2_bih": (1, 4 * LSTM), "l2_bhh": (1, 4 * LSTM),
        "mel_w": (LSTM, N_MELS * MAX_R),
    }
    keys = jax.random.split(key, len(shapes))
    return {name: nrm(k, shp) for k, (name, shp) in zip(keys, shapes.items())}


def pack_params(p):
    """Fold biases in via a ones-row, fuse split matmuls, build the Toeplitz conv, pack slabs.
    NOTE: real nn.Linear / GRUCell / LSTMCell weights are stored [out, in]; transpose on load,
    and slice the torch rnn_input weight rows into (ctx | attn | noise | spk) order."""
    f32 = jnp.float32

    # fused per-layer weights (last row = bias, consumed through an in-kernel ones-column)
    W_p1 = jnp.concatenate([p["pre_w1_mel"], p["pre_w1_noise"], p["pre_b1"]], axis=0)      # [13, 256]
    W_p2 = jnp.concatenate([p["pre_w2"], p["pre_b2"]], axis=0)                             # [257, 16]

    wih = jnp.concatenate([p["gru_wih_ctx"], p["gru_wih_pre"], p["gru_wih_spk"]], axis=0)  # [56, 96]
    whh = p["gru_whh"]
    bih, bhh = p["gru_bih"], p["gru_bhh"]
    W_gru = jnp.concatenate([
        jnp.concatenate([wih, jnp.zeros((wih.shape[0], DEC), f32)], axis=1),
        jnp.concatenate([whh[:, :2 * DEC], jnp.zeros((DEC, DEC), f32), whh[:, 2 * DEC:]], axis=1),
        jnp.concatenate([bih[:, :2 * DEC] + bhh[:, :2 * DEC], bih[:, 2 * DEC:], bhh[:, 2 * DEC:]], axis=1),
    ], axis=0)                                                                             # [89, 128]

    # rnn_input: rows ordered (ctx | attn | noise | spk | bias) to match the contiguous
    # step-slab slice the kernel concatenates (noise|spk).
    W_ri = jnp.concatenate([p["ri_w_ctx"], p["ri_w_attn"], p["ri_w_noise"],
                            p["ri_w_spk"], p["ri_b"]], axis=0)                             # [77, 32]
    W_l1 = jnp.concatenate([p["l1_wih"], p["l1_whh"], p["l1_bih"] + p["l1_bhh"]], axis=0)  # [65, 128]
    W_l2 = jnp.concatenate([p["l2_wih"], p["l2_whh"], p["l2_bih"] + p["l2_bhh"]], axis=0)  # [65, 128]
    W_mel = p["mel_w"]                                                                     # [32, 80]

    # LSA location Conv1d(1, F, K, pad) composed with lsa_L -> one Toeplitz matrix
    W_cl = p["conv_w"] @ p["lsa_L"]                          # [K, DEC]
    b_cl = p["conv_b"] @ p["lsa_L"]                          # [1, DEC]
    j = jnp.arange(T)[:, None]
    t = jnp.arange(T)[None, :]
    k = j - t + PAD                                          # tap index per (src j, dst t)
    taps = jnp.where(((k >= 0) & (k < K_ATTN))[:, :, None],
                     W_cl[jnp.clip(k, 0, K_ATTN - 1)], 0.0)  # [T, T, DEC]
    W_toep = jnp.concatenate([taps.reshape(T, T * DEC),
                              jnp.tile(b_cl, (1, T))], axis=0)                             # [17, T*DEC]

    # query projection tiled across T (free broadcast in flat layout)
    W_q = jnp.tile(jnp.concatenate([p["lsa_W"], p["lsa_Wb"]], axis=0), (1, T))             # [33, T*DEC]

    # block-diagonal v so the energy reduction is one MXU matmul
    vsel = (jnp.eye(T, dtype=f32)[:, None, :] * p["lsa_v"][0][None, :, None]
            ).reshape(T * DEC, T)                                                          # [T*DEC, T]

    def place(slab, row, w):
        return slab.at[row:row + w.shape[0], 0:w.shape[1]].set(w)

    w128 = jnp.zeros((W128_ROWS, 128), f32)
    for row, w in ((R_GRU, W_gru), (R_L1, W_l1), (R_L2, W_l2),
                   (R_RI, W_ri), (R_MEL, W_mel), (R_P2, W_p2)):
        w128 = place(w128, row, w)
    w512 = jnp.zeros((W512_ROWS, 512), f32)
    for row, w in ((R512_TOEP, W_toep), (R512_Q, W_q), (R512_P1, W_p1)):
        w512 = place(w512, row, w)
    return w128, w512, vsel


def init_data(key):
    f32 = jnp.float32
    ks = jax.random.split(key, 12)
    encoder_seq = 0.5 * jax.random.normal(ks[0], (B, T, ENC2), f32)
    encoder_seq_proj = 0.5 * jax.random.normal(ks[1], (B, T, DEC), f32)
    prenet_in = 0.5 * jax.random.normal(ks[2], (B, N_MELS), f32)
    attn_hidden = 0.1 * jax.random.normal(ks[3], (B, DEC), f32)
    rnn1_h = 0.1 * jax.random.normal(ks[4], (B, LSTM), f32)
    rnn2_h = 0.1 * jax.random.normal(ks[5], (B, LSTM), f32)
    rnn1_c = 0.1 * jax.random.normal(ks[6], (B, LSTM), f32)
    rnn2_c = 0.1 * jax.random.normal(ks[7], (B, LSTM), f32)
    context_vec = 0.1 * jax.random.normal(ks[8], (B, ENC2), f32)
    speaker = 0.5 * jax.random.normal(ks[9], (B, SPK), f32)
    noise = 0.5 * jax.random.normal(ks[10], (B, NOISE), f32)
    # LSA cumulative attention after a previous step (t > 0): rows sum to 1, non-negative
    cumulative = jax.nn.softmax(jax.random.normal(ks[11], (B, T), f32), axis=-1)
    phone_len = jnp.array([T, 11], dtype=jnp.int32)
    mask = (jnp.arange(T)[None, :] < phone_len[:, None]).astype(f32)          # [B, T]

    enc_proj_flat = encoder_seq_proj.reshape(B, T * DEC)                      # free, contiguous
    state = jnp.concatenate([attn_hidden, rnn1_h, rnn2_h, rnn1_c, rnn2_c,
                             context_vec, cumulative, mask], axis=-1)         # [B, 224]
    step = jnp.concatenate([prenet_in, noise, speaker], axis=-1)              # [B, 20]
    return encoder_seq, enc_proj_flat, state, step, phone_len


if __name__ == "__main__":
    key = jax.random.PRNGKey(0)
    k_params, k_data = jax.random.split(key)
    w128, w512, vsel = pack_params(init_params(k_params))
    enc_seq, enc_proj_flat, state, step, phone_len = init_data(k_data)

    out = jax.block_until_ready(
        jax.jit(decoder_step)(enc_seq, enc_proj_flat, state, step, w128, w512, vsel))

    # glue: unpack the single output slab (next-step state is out[:, :STATE_W], feed back directly)
    state_new = out[:, :STATE_W]
    mels = out[:, OFF_MELS_OUT:OFF_MELS_OUT + N_MELS * MAX_R].reshape(B, N_MELS, MAX_R)[:, :, :R]
    scores = out[:, OFF_SCORES_OUT:OFF_SCORES_OUT + T].reshape(B, 1, T)
    hidden_states = (state_new[:, OFF_ATTN:OFF_ATTN + DEC],
                     state_new[:, OFF_H1:OFF_H1 + LSTM],
                     state_new[:, OFF_H2:OFF_H2 + LSTM])
    cell_states = (state_new[:, OFF_C1:OFF_C1 + LSTM],
                   state_new[:, OFF_C2:OFF_C2 + LSTM])
    context_vec = state_new[:, OFF_CTX:OFF_CTX + ENC2]

    assert mels.shape == (B, N_MELS, R)
    assert scores.shape == (B, 1, T)
    assert context_vec.shape == (B, ENC2)
    assert all(h.shape == (B, DEC) or h.shape == (B, LSTM) for h in hidden_states)
    assert all(c.shape == (B, LSTM) for c in cell_states)
    assert bool(jnp.all(jnp.isfinite(out)))
    # attention over valid phones sums to 1; padded positions of batch 1 (phone_len=11) are exactly 0
    assert float(jnp.max(jnp.abs(jnp.sum(scores, axis=-1) - 1.0))) < 1e-4
    assert float(jnp.max(jnp.abs(scores[1, 0, 11:]))) == 0.0
    # mask channel of the state slab passes through unchanged (checks slab packing)
    assert float(jnp.max(jnp.abs(state_new[:, OFF_MASK:OFF_MASK + T]
                                 - state[:, OFF_MASK:OFF_MASK + T]))) == 0.0
    print("KERNEL_OK")
</pallas_src>

<mosaic_0001>
module attributes {stable_mosaic.version = 11 : i64} {
  func.func @_decoder_kernel(%arg0: memref<2x16x32xf32, #tpu.memory_space<vmem>>, %arg1: memref<2x512xf32, #tpu.memory_space<vmem>>, %arg2: memref<2x224xf32, #tpu.memory_space<vmem>>, %arg3: memref<2x20xf32, #tpu.memory_space<vmem>>, %arg4: memref<616x128xf32, #tpu.memory_space<vmem>>, %arg5: memref<80x512xf32, #tpu.memory_space<vmem>>, %arg6: memref<512x16xf32, #tpu.memory_space<vmem>>, %arg7: memref<2x384xf32, #tpu.memory_space<vmem>>) attributes {dimension_semantics = [], scalar_prefetch = 0 : i64, scratch_operands = 0 : i64, tpu.core_type = #tpu.core_type<tc>} {
    %cst = arith.constant 1.000000e+00 : f32
    %0 = vector.broadcast %cst : f32 to vector<2x1xf32>
    %c0 = arith.constant 0 : index
    %c0_0 = arith.constant 0 : index
    %1 = vector.load %arg2[%c0, %c0_0] : memref<2x224xf32, #tpu.memory_space<vmem>>, vector<2x224xf32>
    %2 = vector.extract_strided_slice %1 {offsets = [0, 0], sizes = [2, 32], strides = [1, 1]} : vector<2x224xf32> to vector<2x32xf32>
    %3 = vector.extract_strided_slice %1 {offsets = [0, 32], sizes = [2, 32], strides = [1, 1]} : vector<2x224xf32> to vector<2x32xf32>
    %4 = vector.extract_strided_slice %1 {offsets = [0, 64], sizes = [2, 32], strides = [1, 1]} : vector<2x224xf32> to vector<2x32xf32>
    %5 = vector.extract_strided_slice %1 {offsets = [0, 96], sizes = [2, 32], strides = [1, 1]} : vector<2x224xf32> to vector<2x32xf32>
    %6 = vector.extract_strided_slice %1 {offsets = [0, 128], sizes = [2, 32], strides = [1, 1]} : vector<2x224xf32> to vector<2x32xf32>
    %7 = vector.extract_strided_slice %1 {offsets = [0, 160], sizes = [2, 32], strides = [1, 1]} : vector<2x224xf32> to vector<2x32xf32>
    %8 = vector.extract_strided_slice %1 {offsets = [0, 192], sizes = [2, 16], strides = [1, 1]} : vector<2x224xf32> to vector<2x16xf32>
    %9 = vector.extract_strided_slice %1 {offsets = [0, 208], sizes = [2, 16], strides = [1, 1]} : vector<2x224xf32> to vector<2x16xf32>
    %c0_1 = arith.constant 0 : index
    %c0_2 = arith.constant 0 : index
    %10 = vector.load %arg3[%c0_1, %c0_2] : memref<2x20xf32, #tpu.memory_space<vmem>>, vector<2x20xf32>
    %11 = vector.extract_strided_slice %10 {offsets = [0, 0], sizes = [2, 12], strides = [1, 1]} : vector<2x20xf32> to vector<2x12xf32>
    %12 = vector.extract_strided_slice %10 {offsets = [0, 8], sizes = [2, 12], strides = [1, 1]} : vector<2x20xf32> to vector<2x12xf32>
    %13 = vector.extract_strided_slice %10 {offsets = [0, 12], sizes = [2, 8], strides = [1, 1]} : vector<2x20xf32> to vector<2x8xf32>
    %14 = tpu.concatenate %11, %0 in 1 : vector<2x12xf32>, vector<2x1xf32> -> vector<2x13xf32>
    %c64 = arith.constant 64 : index
    %c0_3 = arith.constant 0 : index
    %15 = vector.load %arg5[%c64, %c0_3] : memref<80x512xf32, #tpu.memory_space<vmem>>, vector<13x256xf32>
    %cst_4 = arith.constant dense<0.000000e+00> : vector<2x256xf32>
    %16 = tpu.matmul %14, %15, %cst_4 {dimension_numbers = #tpu.dot_dimension_numbers<[1], [0], [0], [1], [0, 0, 1, 1], [], []>} : vector<2x13xf32>, vector<13x256xf32>, vector<2x256xf32> -> vector<2x256xf32>
    %cst_5 = arith.constant 0.000000e+00 : f32
    %17 = vector.broadcast %cst_5 : f32 to vector<2x256xf32>
    %18 = arith.maximumf %16, %17 : vector<2x256xf32>
    %19 = tpu.concatenate %18, %0 in 1 : vector<2x256xf32>, vector<2x1xf32> -> vector<2x257xf32>
    %c352 = arith.constant 352 : index
    %c0_6 = arith.constant 0 : index
    %20 = vector.load %arg4[%c352, %c0_6] : memref<616x128xf32, #tpu.memory_space<vmem>>, vector<257x16xf32>
    %cst_7 = arith.constant dense<0.000000e+00> : vector<2x16xf32>
    %21 = tpu.matmul %19, %20, %cst_7 {dimension_numbers = #tpu.dot_dimension_numbers<[1], [0], [0], [1], [0, 0, 1, 1], [], []>} : vector<2x257xf32>, vector<257x16xf32>, vector<2x16xf32> -> vector<2x16xf32>
    %cst_8 = arith.constant 0.000000e+00 : f32
    %22 = vector.broadcast %cst_8 : f32 to vector<2x16xf32>
    %23 = arith.maximumf %21, %22 : vector<2x16xf32>
    %24 = tpu.concatenate %7, %23, %13, %2, %0 in 1 : vector<2x32xf32>, vector<2x16xf32>, vector<2x8xf32>, vector<2x32xf32>, vector<2x1xf32> -> vector<2x89xf32>
    %c0_9 = arith.constant 0 : index
    %c0_10 = arith.constant 0 : index
    %25 = vector.load %arg4[%c0_9, %c0_10] : memref<616x128xf32, #tpu.memory_space<vmem>>, vector<89x128xf32>
    %cst_11 = arith.constant dense<0.000000e+00> : vector<2x128xf32>
    %26 = tpu.matmul %24, %25, %cst_11 {dimension_numbers = #tpu.dot_dimension_numbers<[1], [0], [0], [1], [0, 0, 1, 1], [], []>} : vector<2x89xf32>, vector<89x128xf32>, vector<2x128xf32> -> vector<2x128xf32>
    %27 = vector.extract_strided_slice %26 {offsets = [0, 0], sizes = [2, 32], strides = [1, 1]} : vector<2x128xf32> to vector<2x32xf32>
    %28 = arith.negf %27 : vector<2x32xf32>
    %29 = math.exp %28 : vector<2x32xf32>
    %cst_12 = arith.constant 1.000000e+00 : f32
    %30 = vector.broadcast %cst_12 : f32 to vector<2x32xf32>
    %31 = arith.addf %30, %29 : vector<2x32xf32>
    %32 = arith.divf %30, %31 : vector<2x32xf32>
    %33 = vector.extract_strided_slice %26 {offsets = [0, 32], sizes = [2, 32], strides = [1, 1]} : vector<2x128xf32> to vector<2x32xf32>
    %34 = arith.negf %33 : vector<2x32xf32>
    %35 = math.exp %34 : vector<2x32xf32>
    %cst_13 = arith.constant 1.000000e+00 : f32
    %36 = vector.broadcast %cst_13 : f32 to vector<2x32xf32>
    %37 = arith.addf %36, %35 : vector<2x32xf32>
    %38 = arith.divf %36, %37 : vector<2x32xf32>
    %39 = vector.extract_strided_slice %26 {offsets = [0, 64], sizes = [2, 32], strides = [1, 1]} : vector<2x128xf32> to vector<2x32xf32>
    %40 = vector.extract_strided_slice %26 {offsets = [0, 96], sizes = [2, 32], strides = [1, 1]} : vector<2x128xf32> to vector<2x32xf32>
    %41 = arith.mulf %32, %40 : vector<2x32xf32>
    %42 = arith.addf %39, %41 : vector<2x32xf32>
    %43 = math.tanh %42 : vector<2x32xf32>
    %cst_14 = arith.constant 1.000000e+00 : f32
    %44 = vector.broadcast %cst_14 : f32 to vector<2x32xf32>
    %45 = arith.subf %44, %38 : vector<2x32xf32>
    %46 = arith.mulf %45, %43 : vector<2x32xf32>
    %47 = arith.mulf %38, %2 : vector<2x32xf32>
    %48 = arith.addf %46, %47 : vector<2x32xf32>
    %49 = tpu.concatenate %8, %0 in 1 : vector<2x16xf32>, vector<2x1xf32> -> vector<2x17xf32>
    %c0_15 = arith.constant 0 : index
    %c0_16 = arith.constant 0 : index
    %50 = vector.load %arg5[%c0_15, %c0_16] : memref<80x512xf32, #tpu.memory_space<vmem>>, vector<17x512xf32>
    %cst_17 = arith.constant dense<0.000000e+00> : vector<2x512xf32>
    %51 = tpu.matmul %49, %50, %cst_17 {dimension_numbers = #tpu.dot_dimension_numbers<[1], [0], [0], [1], [0, 0, 1, 1], [], []>} : vector<2x17xf32>, vector<17x512xf32>, vector<2x512xf32> -> vector<2x512xf32>
    %52 = tpu.concatenate %48, %0 in 1 : vector<2x32xf32>, vector<2x1xf32> -> vector<2x33xf32>
    %c24 = arith.constant 24 : index
    %c0_18 = arith.constant 0 : index
    %53 = vector.load %arg5[%c24, %c0_18] : memref<80x512xf32, #tpu.memory_space<vmem>>, vector<33x512xf32>
    %cst_19 = arith.constant dense<0.000000e+00> : vector<2x512xf32>
    %54 = tpu.matmul %52, %53, %cst_19 {dimension_numbers = #tpu.dot_dimension_numbers<[1], [0], [0], [1], [0, 0, 1, 1], [], []>} : vector<2x33xf32>, vector<33x512xf32>, vector<2x512xf32> -> vector<2x512xf32>
    %55 = arith.addf %51, %54 : vector<2x512xf32>
    %c0_20 = arith.constant 0 : index
    %c0_21 = arith.constant 0 : index
    %56 = vector.load %arg1[%c0_20, %c0_21] : memref<2x512xf32, #tpu.memory_space<vmem>>, vector<2x512xf32>
    %57 = arith.addf %55, %56 : vector<2x512xf32>
    %58 = math.tanh %57 : vector<2x512xf32>
    %c0_22 = arith.constant 0 : index
    %c0_23 = arith.constant 0 : index
    %59 = vector.load %arg6[%c0_22, %c0_23] : memref<512x16xf32, #tpu.memory_space<vmem>>, vector<512x16xf32>
    %cst_24 = arith.constant dense<0.000000e+00> : vector<2x16xf32>
    %60 = tpu.matmul %58, %59, %cst_24 {dimension_numbers = #tpu.dot_dimension_numbers<[1], [0], [0], [1], [0, 0, 1, 1], [], []>} : vector<2x512xf32>, vector<512x16xf32>, vector<2x16xf32> -> vector<2x16xf32>
    %cst_25 = arith.constant 5.000000e-01 : f32
    %61 = vector.broadcast %cst_25 : f32 to vector<2x16xf32>
    %62 = arith.cmpf ogt, %9, %61 : vector<2x16xf32>
    %cst_26 = arith.constant -1.000000e+30 : f32
    %63 = vector.broadcast %cst_26 : f32 to vector<2x16xf32>
    %64 = arith.select %62, %60, %63 : vector<2x16xi1>, vector<2x16xf32>
    %cst_27 = arith.constant dense<0xFF800000> : vector<2xf32>
    %65 = vector.multi_reduction <maximumf>, %64, %cst_27 [1] : vector<2x16xf32> to vector<2xf32>
    %66 = vector.shape_cast %65 : vector<2xf32> to vector<2x1xf32>
    %67 = vector.broadcast %66 : vector<2x1xf32> to vector<2x16xf32>
    %68 = arith.subf %64, %67 : vector<2x16xf32>
    %69 = math.exp %68 : vector<2x16xf32>
    %70 = arith.mulf %69, %9 : vector<2x16xf32>
    %cst_28 = arith.constant dense<0.000000e+00> : vector<2xf32>
    %71 = vector.multi_reduction <add>, %70, %cst_28 [1] : vector<2x16xf32> to vector<2xf32>
    %72 = vector.shape_cast %71 : vector<2xf32> to vector<2x1xf32>
    %73 = vector.broadcast %72 : vector<2x1xf32> to vector<2x16xf32>
    %74 = arith.divf %70, %73 : vector<2x16xf32>
    %75 = arith.addf %8, %74 : vector<2x16xf32>
    %76 = vector.shape_cast %74 : vector<2x16xf32> to vector<2x16x1xf32>
    %c0_29 = arith.constant 0 : index
    %c0_30 = arith.constant 0 : index
    %c0_31 = arith.constant 0 : index
    %77 = vector.load %arg0[%c0_29, %c0_30, %c0_31] : memref<2x16x32xf32, #tpu.memory_space<vmem>>, vector<2x16x32xf32>
    %78 = vector.broadcast %76 : vector<2x16x1xf32> to vector<2x16x32xf32>
    %79 = arith.mulf %78, %77 : vector<2x16x32xf32>
    %cst_32 = arith.constant dense<0.000000e+00> : vector<2x32xf32>
    %80 = vector.multi_reduction <add>, %79, %cst_32 [1] : vector<2x16x32xf32> to vector<2x32xf32>
    %81 = tpu.concatenate %80, %48, %12, %0 in 1 : vector<2x32xf32>, vector<2x32xf32>, vector<2x12xf32>, vector<2x1xf32> -> vector<2x77xf32>
    %c240 = arith.constant 240 : index
    %c0_33 = arith.constant 0 : index
    %82 = vector.load %arg4[%c240, %c0_33] : memref<616x128xf32, #tpu.memory_space<vmem>>, vector<77x32xf32>
    %cst_34 = arith.constant dense<0.000000e+00> : vector<2x32xf32>
    %83 = tpu.matmul %81, %82, %cst_34 {dimension_numbers = #tpu.dot_dimension_numbers<[1], [0], [0], [1], [0, 0, 1, 1], [], []>} : vector<2x77xf32>, vector<77x32xf32>, vector<2x32xf32> -> vector<2x32xf32>
    %84 = tpu.concatenate %83, %3, %0 in 1 : vector<2x32xf32>, vector<2x32xf32>, vector<2x1xf32> -> vector<2x65xf32>
    %c96 = arith.constant 96 : index
    %c0_35 = arith.constant 0 : index
    %85 = vector.load %arg4[%c96, %c0_35] : memref<616x128xf32, #tpu.memory_space<vmem>>, vector<65x128xf32>
    %cst_36 = arith.constant dense<0.000000e+00> : vector<2x128xf32>
    %86 = tpu.matmul %84, %85, %cst_36 {dimension_numbers = #tpu.dot_dimension_numbers<[1], [0], [0], [1], [0, 0, 1, 1], [], []>} : vector<2x65xf32>, vector<65x128xf32>, vector<2x128xf32> -> vector<2x128xf32>
    %87 = vector.extract_strided_slice %86 {offsets = [0, 0], sizes = [2, 32], strides = [1, 1]} : vector<2x128xf32> to vector<2x32xf32>
    %88 = arith.negf %87 : vector<2x32xf32>
    %89 = math.exp %88 : vector<2x32xf32>
    %cst_37 = arith.constant 1.000000e+00 : f32
    %90 = vector.broadcast %cst_37 : f32 to vector<2x32xf32>
    %91 = arith.addf %90, %89 : vector<2x32xf32>
    %92 = arith.divf %90, %91 : vector<2x32xf32>
    %93 = vector.extract_strided_slice %86 {offsets = [0, 32], sizes = [2, 32], strides = [1, 1]} : vector<2x128xf32> to vector<2x32xf32>
    %94 = arith.negf %93 : vector<2x32xf32>
    %95 = math.exp %94 : vector<2x32xf32>
    %cst_38 = arith.constant 1.000000e+00 : f32
    %96 = vector.broadcast %cst_38 : f32 to vector<2x32xf32>
    %97 = arith.addf %96, %95 : vector<2x32xf32>
    %98 = arith.divf %96, %97 : vector<2x32xf32>
    %99 = vector.extract_strided_slice %86 {offsets = [0, 64], sizes = [2, 32], strides = [1, 1]} : vector<2x128xf32> to vector<2x32xf32>
    %100 = math.tanh %99 : vector<2x32xf32>
    %101 = vector.extract_strided_slice %86 {offsets = [0, 96], sizes = [2, 32], strides = [1, 1]} : vector<2x128xf32> to vector<2x32xf32>
    %102 = arith.negf %101 : vector<2x32xf32>
    %103 = math.exp %102 : vector<2x32xf32>
    %cst_39 = arith.constant 1.000000e+00 : f32
    %104 = vector.broadcast %cst_39 : f32 to vector<2x32xf32>
    %105 = arith.addf %104, %103 : vector<2x32xf32>
    %106 = arith.divf %104, %105 : vector<2x32xf32>
    %107 = arith.mulf %98, %5 : vector<2x32xf32>
    %108 = arith.mulf %92, %100 : vector<2x32xf32>
    %109 = arith.addf %107, %108 : vector<2x32xf32>
    %110 = math.tanh %109 : vector<2x32xf32>
    %111 = arith.mulf %106, %110 : vector<2x32xf32>
    %112 = arith.addf %83, %111 : vector<2x32xf32>
    %113 = tpu.concatenate %112, %4, %0 in 1 : vector<2x32xf32>, vector<2x32xf32>, vector<2x1xf32> -> vector<2x65xf32>
    %c168 = arith.constant 168 : index
    %c0_40 = arith.constant 0 : index
    %114 = vector.load %arg4[%c168, %c0_40] : memref<616x128xf32, #tpu.memory_space<vmem>>, vector<65x128xf32>
    %cst_41 = arith.constant dense<0.000000e+00> : vector<2x128xf32>
    %115 = tpu.matmul %113, %114, %cst_41 {dimension_numbers = #tpu.dot_dimension_numbers<[1], [0], [0], [1], [0, 0, 1, 1], [], []>} : vector<2x65xf32>, vector<65x128xf32>, vector<2x128xf32> -> vector<2x128xf32>
    %116 = vector.extract_strided_slice %115 {offsets = [0, 0], sizes = [2, 32], strides = [1, 1]} : vector<2x128xf32> to vector<2x32xf32>
    %117 = arith.negf %116 : vector<2x32xf32>
    %118 = math.exp %117 : vector<2x32xf32>
    %cst_42 = arith.constant 1.000000e+00 : f32
    %119 = vector.broadcast %cst_42 : f32 to vector<2x32xf32>
    %120 = arith.addf %119, %118 : vector<2x32xf32>
    %121 = arith.divf %119, %120 : vector<2x32xf32>
    %122 = vector.extract_strided_slice %115 {offsets = [0, 32], sizes = [2, 32], strides = [1, 1]} : vector<2x128xf32> to vector<2x32xf32>
    %123 = arith.negf %122 : vector<2x32xf32>
    %124 = math.exp %123 : vector<2x32xf32>
    %cst_43 = arith.constant 1.000000e+00 : f32
    %125 = vector.broadcast %cst_43 : f32 to vector<2x32xf32>
    %126 = arith.addf %125, %124 : vector<2x32xf32>
    %127 = arith.divf %125, %126 : vector<2x32xf32>
    %128 = vector.extract_strided_slice %115 {offsets = [0, 64], sizes = [2, 32], strides = [1, 1]} : vector<2x128xf32> to vector<2x32xf32>
    %129 = math.tanh %128 : vector<2x32xf32>
    %130 = vector.extract_strided_slice %115 {offsets = [0, 96], sizes = [2, 32], strides = [1, 1]} : vector<2x128xf32> to vector<2x32xf32>
    %131 = arith.negf %130 : vector<2x32xf32>
    %132 = math.exp %131 : vector<2x32xf32>
    %cst_44 = arith.constant 1.000000e+00 : f32
    %133 = vector.broadcast %cst_44 : f32 to vector<2x32xf32>
    %134 = arith.addf %133, %132 : vector<2x32xf32>
    %135 = arith.divf %133, %134 : vector<2x32xf32>
    %136 = arith.mulf %127, %6 : vector<2x32xf32>
    %137 = arith.mulf %121, %129 : vector<2x32xf32>
    %138 = arith.addf %136, %137 : vector<2x32xf32>
    %139 = math.tanh %138 : vector<2x32xf32>
    %140 = arith.mulf %135, %139 : vector<2x32xf32>
    %141 = arith.addf %112, %140 : vector<2x32xf32>
    %c320 = arith.constant 320 : index
    %c0_45 = arith.constant 0 : index
    %142 = vector.load %arg4[%c320, %c0_45] : memref<616x128xf32, #tpu.memory_space<vmem>>, vector<32x80xf32>
    %cst_46 = arith.constant dense<0.000000e+00> : vector<2x80xf32>
    %143 = tpu.matmul %141, %142, %cst_46 {dimension_numbers = #tpu.dot_dimension_numbers<[1], [0], [0], [1], [0, 0, 1, 1], [], []>} : vector<2x32xf32>, vector<32x80xf32>, vector<2x80xf32> -> vector<2x80xf32>
    %cst_47 = arith.constant 0.000000e+00 : f32
    %144 = vector.broadcast %cst_47 : f32 to vector<2x64xf32>
    %145 = tpu.concatenate %48, %111, %140, %109, %138, %80, %75, %9, %143, %74, %144 in 1 : vector<2x32xf32>, vector<2x32xf32>, vector<2x32xf32>, vector<2x32xf32>, vector<2x32xf32>, vector<2x32xf32>, vector<2x16xf32>, vector<2x16xf32>, vector<2x80xf32>, vector<2x16xf32>, vector<2x64xf32> -> vector<2x384xf32>
    %c0_48 = arith.constant 0 : index
    %c0_49 = arith.constant 0 : index
    %146 = vector.load %arg7[%c0_48, %c0_49] : memref<2x384xf32, #tpu.memory_space<vmem>>, vector<2x384xf32>
    tpu.vector_store %arg7[%c0_48, %c0_49], %145 {strides = array<i32>} : memref<2x384xf32, #tpu.memory_space<vmem>>, vector<2x384xf32>,
    return
  }
}

</mosaic_0001>

<llo_original>
// kernel: decoder_step.1
$region0: #{decoder_step.1}
  #allocation0 [shape = 'u32[]', space=smem, size = 0x4, offset = 0x4, fixed_abs, tag = 'smem constant byte address 0x4 - core index']
  #allocation1 [shape = 'u32[144,128]{1,0:T(1,128)}', space=vmem, size = 0x12000, scoped, tag = 'internal scratch']
  %s0 = inlined_call_operand.vmem [shape: f32[2,16,32], index: 0, kind: input, shape index: {}]
  %s1 = inlined_call_operand.vmem [shape: f32[2,512], index: 1, kind: input, shape index: {}]
  %s2 = inlined_call_operand.vmem [shape: f32[2,224], index: 2, kind: input, shape index: {}]
  %s3 = inlined_call_operand.vmem [shape: f32[2,20], index: 3, kind: input, shape index: {}]
  %s4 = inlined_call_operand.hbm [shape: f32[616,128], index: 4, kind: input, shape index: {}]
  %s5 = inlined_call_operand.vmem [shape: f32[80,512], index: 5, kind: input, shape index: {}]
  %s6 = inlined_call_operand.vmem [shape: f32[512,16], index: 6, kind: input, shape index: {}]
  %s7 = inlined_call_operand.hbm [shape: f32[2,384], index: 7, kind: output, shape index: {}]
  %s8 = sld [smem:[#allocation0]]
  $region42: #{decoder_step.1} parent=0
    _
  %s10 = ssub.s32 1, %s8
  %s11 = scalar_select 0, %s10, %s8
  $region1: #{decoder_step.1} parent=0
    #allocation2 [shape = 'u8[315392]{0}', space=vmem, size = 0x4d000, scoped, tag = 'input window, operand 4, single buffered']
    #allocation3 [shape = 's32[1]{0}', space=sflag, size = 0x4, scoped, tag = 'scoped memory for decoder_step.1']
    #allocation4 [shape = 's32[1]{0}', space=sflag, size = 0x4, scoped, tag = 'scoped memory for decoder_step.1']
    #allocation5 [shape = 'u8[3072]{0}', space=vmem, size = 0xc00, scoped, tag = 'output window, operand 0, single buffered']
    %12 = vsyncpa [#allocation3], 0
    %13 = vsyncpa [#allocation4], 0
    // Predicated region
    $region2: #{decoder_step.1} parent=1 // pred_check
      _
    $region3: #{decoder_step.1} parent=1 // pred_check_branch
      %15 = sbr.rel (0) target = $region5
    $region4: #{decoder_step.1} parent=1 // pred_region
      _
    $region5: #{decoder_step.1} parent=1 // pred_fallthru
      _
    // Predicated region
    $region6: #{decoder_step.1} parent=1 // pred_check
      _
    $region7: #{decoder_step.1} parent=1 // pred_check_branch
      %17 = sbr.rel (0) target = $region9
    $region8: #{decoder_step.1} parent=1 // pred_region
      _
    $region9: #{decoder_step.1} parent=1 // pred_fallthru
      _
    // Predicated region
    $region10: #{decoder_step.1} parent=1 // pred_check
      _
    $region11: #{decoder_step.1} parent=1 // pred_check_branch
      %19 = sbr.rel (0) target = $region13
    $region12: #{decoder_step.1} parent=1 // pred_region
      _
    $region13: #{decoder_step.1} parent=1 // pred_fallthru
      _
    // Predicated region
    $region14: #{decoder_step.1} parent=1 // pred_check
      _
    $region15: #{decoder_step.1} parent=1 // pred_check_branch
      %21 = sbr.rel (0) target = $region17
    $region16: #{decoder_step.1} parent=1 // pred_region
      _
    $region17: #{decoder_step.1} parent=1 // pred_fallthru
      _
    // Predicated region
    $region18: #{decoder_step.1} parent=1 // pred_check
      _
    $region19: #{decoder_step.1} parent=1 // pred_check_branch
      %23 = sbr.rel (0) target = $region21
    $region20: #{decoder_step.1} parent=1 // pred_region
      %s25 = ssub.s32 9856, 9856
      %26 = vsyncadd [#allocation3], %s25
      %s27 = sshll.u32 [#allocation2], 4
      %s28 = int_to_ptr.vmem [resolvable:$true] %s27
      %33 = dma.hbm_to_vmem [thread:$0]  %s4, 9856, %s28, [#allocation3], 128, 128, 8
    $region21: #{decoder_step.1} parent=1 // pred_fallthru
      _
    // Predicated region
    $region22: #{decoder_step.1} parent=1 // pred_check
      _
    $region23: #{decoder_step.1} parent=1 // pred_check_branch
      %35 = sbr.rel (0) target = $region25
    $region24: #{decoder_step.1} parent=1 // pred_region
      _
    $region25: #{decoder_step.1} parent=1 // pred_fallthru
      _
    // Predicated region
    $region26: #{decoder_step.1} parent=1 // pred_check
      _
    $region27: #{decoder_step.1} parent=1 // pred_check_branch
      %37 = sbr.rel (0) target = $region29
    $region28: #{decoder_step.1} parent=1 // pred_region
      _
    $region29: #{decoder_step.1} parent=1 // pred_fallthru
      _
    // Predicated region
    $region30: #{decoder_step.1} parent=1 // pred_check
      _
    $region31: #{decoder_step.1} parent=1 // pred_check_branch
      %39 = sbr.rel (0) target = $region33
    $region32: #{decoder_step.1} parent=1 // pred_region
      %40 = dma.done [#allocation3], 9856
    $region33: #{decoder_step.1} parent=1 // pred_fallthru
      _
    %v41 = vld [vmem:[%s2] sm:$0xf]
    %v42 = vld [vmem:[%s3] sm:$0x3]
    %vm43 = vcmask 97280
    %v44 = vsel %vm43, %v42, 1.0
    %v45 = vld [vmem:[%s5 + $0x100] sm:$0xff]
    %v46 = vld [vmem:[%s5 + $0x108] sm:$0xff]
    %v47 = vld [vmem:[%s5 + $0x120] sm:$0x1f]
    %v48 = vld [vmem:[%s5 + $0x128] sm:$0x1f]
    %vm49 = vcmask 105472
    %v51 = vsel %vm49, %v44, 0
    %vm53 = vcmask 1044480
    %v55 = vsel %vm53, %v47, 0
    %v58 = vsel %vm53, %v48, 0
    %60 = vmatprep.subr.mxu0 0.0
    %61 = vmatpush1.msra.mxu0 0.0
    %62 = vmatprep.subr.mxu0 0.0
    %63 = vmatpush1.msra.mxu0 0.0
    %64 = vmatprep.subr.mxu0 0.0
    %65 = vmatpush1.msra.mxu0 0.0
    %66 = vmatprep.subr.mxu0 0.0
    %67 = vmatpush1.msra.mxu0 0.0
    %68 = vmatprep.subr.mxu0 0.0
    %69 = vmatpush1.msra.mxu0 0.0
    %70 = vmatprep.subr.mxu0 0.0
    %71 = vmatpush1.msra.mxu0 0.0
    %72 = vmatprep.subr.mxu0 0.0
    %73 = vmatpush1.msra.mxu0 0.0
    %74 = vmatprep.subr.mxu0 0.0
    %75 = vmatpush1.msra.mxu0 0.0
    %76 = vmatprep.subr.mxu0 0.0
    %77 = vmatpush1.msra.mxu0 0.0
    %78 = vmatprep.subr.mxu0 0.0
    %79 = vmatpush1.msra.mxu0 0.0
    %80 = vmatprep.subr.mxu0 0.0
    %81 = vmatpush1.msra.mxu0 0.0
    %82 = vmatprep.subr.mxu0 0.0
    %83 = vmatpush1.msra.mxu0 0.0
    %84 = vmatprep.subr.mxu0 0.0
    %85 = vmatpush1.msra.mxu0 0.0
    %86 = vmatprep.subr.mxu0 0.0
    %87 = vmatpush1.msra.mxu0 0.0
    %88 = vmatprep.subr.mxu0 %v58
    %89 = vmatpush1.msra.mxu0 %v55
    %90 = vmatprep.subr.mxu0 %v46
    %91 = vmatpush1.msra.mxu0 %v45
    %92 = vmatprep.subr.mxu0 0.0
    %93 = vmatpush2.msra.mxu0 0.0
    %94 = vmatprep.subr.mxu0 0.0
    %95 = vmatpush2.msra.mxu0 0.0
    %96 = vmatprep.subr.mxu0 0.0
    %97 = vmatpush2.msra.mxu0 0.0
    %98 = vmatprep.subr.mxu0 0.0
    %99 = vmatpush2.msra.mxu0 0.0
    %100 = vmatprep.subr.mxu0 0.0
    %101 = vmatpush2.msra.mxu0 0.0
    %102 = vmatprep.subr.mxu0 0.0
    %103 = vmatpush2.msra.mxu0 0.0
    %104 = vmatprep.subr.mxu0 0.0
    %105 = vmatpush2.msra.mxu0 0.0
    %106 = vmatprep.subr.mxu0 0.0
    %107 = vmatpush2.msra.mxu0 0.0
    %108 = vmatprep.subr.mxu0 0.0
    %109 = vmatpush2.msra.mxu0 0.0
    %110 = vmatprep.subr.mxu0 0.0
    %111 = vmatpush2.msra.mxu0 0.0
    %112 = vmatprep.subr.mxu0 0.0
    %113 = vmatpush2.msra.mxu0 0.0
    %114 = vmatprep.subr.mxu0 0.0
    %115 = vmatpush2.msra.mxu0 0.0
    %116 = vmatprep.subr.mxu0 0.0
    %117 = vmatpush2.msra.mxu0 0.0
    %118 = vmatprep.subr.mxu0 0.0
    %119 = vmatpush2.msra.mxu0 0.0
    %120 = vmatprep.subr.mxu0 0.0
    %121 = vmatpush2.msra.mxu0 0.0
    %122 = vmatprep.subr.mxu0 0.0
    %123 = vmatpush2.msra.mxu0 0.0
    %124 = vmatprep.mubr.f32.mxu0 0.0
    %125 = vmatmul.mubr.f32.gmra.mxu0 %v51
    %v126 = vpop.f32.mrf.mxu0
    %v127 = vadd.f32 0.0, %v126
    %v128 = vpop.f32.mrf.mxu0
    %v129 = vadd.f32 0.0, %v128
    %130 = vdwg.mxu0
    %v131 = vmax.f32 %v127, 0.0
    %v132 = vmax.f32 %v129, 0.0
    %v133 = vld [vmem:[#allocation2 + $0x160] sm:$0xff]
    %v134 = vld [vmem:[#allocation2 + $0x168] sm:$0xff]
    %v135 = vld [vmem:[#allocation2 + $0x170] sm:$0xff]
    %v136 = vld [vmem:[#allocation2 + $0x178] sm:$0xff]
    %v137 = vld [vmem:[#allocation2 + $0x180] sm:$0xff]
    %v138 = vld [vmem:[#allocation2 + $0x188] sm:$0xff]
    %v139 = vld [vmem:[#allocation2 + $0x190] sm:$0xff]
    %v140 = vld [vmem:[#allocation2 + $0x198] sm:$0xff]
    %v141 = vld [vmem:[#allocation2 + $0x1a0] sm:$0xff]
    %v142 = vld [vmem:[#allocation2 + $0x1a8] sm:$0xff]
    %v143 = vld [vmem:[#allocation2 + $0x1b0] sm:$0xff]
    %v144 = vld [vmem:[#allocation2 + $0x1b8] sm:$0xff]
    %v145 = vld [vmem:[#allocation2 + $0x1c0] sm:$0xff]
    %v146 = vld [vmem:[#allocation2 + $0x1c8] sm:$0xff]
    %v147 = vld [vmem:[#allocation2 + $0x1d0] sm:$0xff]
    %v148 = vld [vmem:[#allocation2 + $0x1d8] sm:$0xff]
    %v149 = vld [vmem:[#allocation2 + $0x1e0] sm:$0xff]
    %v150 = vld [vmem:[#allocation2 + $0x1e8] sm:$0xff]
    %v151 = vld [vmem:[#allocation2 + $0x1f0] sm:$0xff]
    %v152 = vld [vmem:[#allocation2 + $0x1f8] sm:$0xff]
    %v153 = vld [vmem:[#allocation2 + $0x200] sm:$0xff]
    %v154 = vld [vmem:[#allocation2 + $0x208] sm:$0xff]
    %v155 = vld [vmem:[#allocation2 + $0x210] sm:$0xff]
    %v156 = vld [vmem:[#allocation2 + $0x218] sm:$0xff]
    %v157 = vld [vmem:[#allocation2 + $0x220] sm:$0xff]
    %v158 = vld [vmem:[#allocation2 + $0x228] sm:$0xff]
    %v159 = vld [vmem:[#allocation2 + $0x230] sm:$0xff]
    %v160 = vld [vmem:[#allocation2 + $0x238] sm:$0xff]
    %v161 = vld [vmem:[#allocation2 + $0x240] sm:$0xff]
    %v162 = vld [vmem:[#allocation2 + $0x248] sm:$0xff]
    %v163 = vld [vmem:[#allocation2 + $0x250] sm:$0xff]
    %v164 = vld [vmem:[#allocation2 + $0x258] sm:$0xff]
    %v165 = vld [vmem:[#allocation2 + $0x260] sm:$0x1]
    %vm166 = vcmask 7168
    %v168 = vsel %vm166, 1.0, 0
    %vm170 = vcmask 1040384
    %v172 = vsel %vm170, %v165, 0
    %174 = vmatprep.subr.mxu0 0.0
    %175 = vmatpush1.msra.mxu0 %v148
    %176 = vmatprep.subr.mxu0 0.0
    %177 = vmatpush1.msra.mxu0 %v147
    %178 = vmatprep.subr.mxu0 0.0
    %179 = vmatpush1.msra.mxu0 %v146
    %180 = vmatprep.subr.mxu0 0.0
    %181 = vmatpush1.msra.mxu0 %v145
    %182 = vmatprep.subr.mxu0 0.0
    %183 = vmatpush1.msra.mxu0 %v144
    %184 = vmatprep.subr.mxu0 0.0
    %185 = vmatpush1.msra.mxu0 %v143
    %186 = vmatprep.subr.mxu0 0.0
    %187 = vmatpush1.msra.mxu0 %v142
    %188 = vmatprep.subr.mxu0 0.0
    %189 = vmatpush1.msra.mxu0 %v141
    %190 = vmatprep.subr.mxu0 0.0
    %191 = vmatpush1.msra.mxu0 %v140
    %192 = vmatprep.subr.mxu0 0.0
    %193 = vmatpush1.msra.mxu0 %v139
    %194 = vmatprep.subr.mxu0 0.0
    %195 = vmatpush1.msra.mxu0 %v138
    %196 = vmatprep.subr.mxu0 0.0
    %197 = vmatpush1.msra.mxu0 %v137
    %198 = vmatprep.subr.mxu0 0.0
    %199 = vmatpush1.msra.mxu0 %v136
    %200 = vmatprep.subr.mxu0 0.0
    %201 = vmatpush1.msra.mxu0 %v135
    %202 = vmatprep.subr.mxu0 0.0
    %203 = vmatpush1.msra.mxu0 %v134
    %204 = vmatprep.subr.mxu0 0.0
    %205 = vmatpush1.msra.mxu0 %v133
    %206 = vmatprep.subr.mxu0 0.0
    %207 = vmatpush2.msra.mxu0 %v164
    %208 = vmatprep.subr.mxu0 0.0
    %209 = vmatpush2.msra.mxu0 %v163
    %210 = vmatprep.subr.mxu0 0.0
    %211 = vmatpush2.msra.mxu0 %v162
    %212 = vmatprep.subr.mxu0 0.0
    %213 = vmatpush2.msra.mxu0 %v161
    %214 = vmatprep.subr.mxu0 0.0
    %215 = vmatpush2.msra.mxu0 %v160
    %216 = vmatprep.subr.mxu0 0.0
    %217 = vmatpush2.msra.mxu0 %v159
    %218 = vmatprep.subr.mxu0 0.0
    %219 = vmatpush2.msra.mxu0 %v158
    %220 = vmatprep.subr.mxu0 0.0
    %221 = vmatpush2.msra.mxu0 %v157
    %222 = vmatprep.subr.mxu0 0.0
    %223 = vmatpush2.msra.mxu0 %v156
    %224 = vmatprep.subr.mxu0 0.0
    %225 = vmatpush2.msra.mxu0 %v155
    %226 = vmatprep.subr.mxu0 0.0
    %227 = vmatpush2.msra.mxu0 %v154
    %228 = vmatprep.subr.mxu0 0.0
    %229 = vmatpush2.msra.mxu0 %v153
    %230 = vmatprep.subr.mxu0 0.0
    %231 = vmatpush2.msra.mxu0 %v152
    %232 = vmatprep.subr.mxu0 0.0
    %233 = vmatpush2.msra.mxu0 %v151
    %234 = vmatprep.subr.mxu0 0.0
    %235 = vmatpush2.msra.mxu0 %v150
    %236 = vmatprep.subr.mxu0 0.0
    %237 = vmatpush2.msra.mxu0 %v149
    %238 = vmatprep.mubr.f32.mxu0 %v132
    %239 = vmatmul.mubr.f32.gmra.mxu0 %v131
    %v240 = vpop.f32.mrf.mxu0
    %v241 = vadd.f32 0.0, %v240
    %v242 = vpop.f32.mrf.mxu0
    %243 = vdwg.mxu0
    %244 = vmatprep.subr.mxu0 0.0
    %245 = vmatpush1.msra.mxu0 0.0
    %246 = vmatprep.subr.mxu0 0.0
    %247 = vmatpush1.msra.mxu0 0.0
    %248 = vmatprep.subr.mxu0 0.0
    %249 = vmatpush1.msra.mxu0 0.0
    %250 = vmatprep.subr.mxu0 0.0
    %251 = vmatpush1.msra.mxu0 0.0
    %252 = vmatprep.subr.mxu0 0.0
    %253 = vmatpush1.msra.mxu0 0.0
    %254 = vmatprep.subr.mxu0 0.0
    %255 = vmatpush1.msra.mxu0 0.0
    %256 = vmatprep.subr.mxu0 0.0
    %257 = vmatpush1.msra.mxu0 0.0
    %258 = vmatprep.subr.mxu0 0.0
    %259 = vmatpush1.msra.mxu0 0.0
    %260 = vmatprep.subr.mxu0 0.0
    %261 = vmatpush1.msra.mxu0 0.0
    %262 = vmatprep.subr.mxu0 0.0
    %263 = vmatpush1.msra.mxu0 0.0
    %264 = vmatprep.subr.mxu0 0.0
    %265 = vmatpush1.msra.mxu0 0.0
    %266 = vmatprep.subr.mxu0 0.0
    %267 = vmatpush1.msra.mxu0 0.0
    %268 = vmatprep.subr.mxu0 0.0
    %269 = vmatpush1.msra.mxu0 0.0
    %270 = vmatprep.subr.mxu0 0.0
    %271 = vmatpush1.msra.mxu0 0.0
    %272 = vmatprep.subr.mxu0 0.0
    %273 = vmatpush1.msra.mxu0 0.0
    %274 = vmatprep.subr.mxu0 0.0
    %275 = vmatpush1.msra.mxu0 %v172
    %276 = vmatprep.subr.mxu0 0.0
    %277 = vmatpush2.msra.mxu0 0.0
    %278 = vmatprep.subr.mxu0 0.0
    %279 = vmatpush2.msra.mxu0 0.0
    %280 = vmatprep.subr.mxu0 0.0
    %281 = vmatpush2.msra.mxu0 0.0
    %282 = vmatprep.subr.mxu0 0.0
    %283 = vmatpush2.msra.mxu0 0.0
    %284 = vmatprep.subr.mxu0 0.0
    %285 = vmatpush2.msra.mxu0 0.0
    %286 = vmatprep.subr.mxu0 0.0
    %287 = vmatpush2.msra.mxu0 0.0
    %288 = vmatprep.subr.mxu0 0.0
    %289 = vmatpush2.msra.mxu0 0.0
    %290 = vmatprep.subr.mxu0 0.0
    %291 = vmatpush2.msra.mxu0 0.0
    %292 = vmatprep.subr.mxu0 0.0
    %293 = vmatpush2.msra.mxu0 0.0
    %294 = vmatprep.subr.mxu0 0.0
    %295 = vmatpush2.msra.mxu0 0.0
    %296 = vmatprep.subr.mxu0 0.0
    %297 = vmatpush2.msra.mxu0 0.0
    %298 = vmatprep.subr.mxu0 0.0
    %299 = vmatpush2.msra.mxu0 0.0
    %300 = vmatprep.subr.mxu0 0.0
    %301 = vmatpush2.msra.mxu0 0.0
    %302 = vmatprep.subr.mxu0 0.0
    %303 = vmatpush2.msra.mxu0 0.0
    %304 = vmatprep.subr.mxu0 0.0
    %305 = vmatpush2.msra.mxu0 0.0
    %306 = vmatprep.subr.mxu0 0.0
    %307 = vmatpush2.msra.mxu0 0.0
    %308 = vmatprep.mubr.f32.mxu0 0.0
    %309 = vmatmul.mubr.f32.gmra.mxu0 %v168
    %v310 = vpop.f32.mrf.mxu0
    %v311 = vadd.f32 %v241, %v310
    %v312 = vpop.f32.mrf.mxu0
    %313 = vdwg.mxu0
    %v314 = vmax.f32 %v311, 0.0
    %v317 = vunpack.c.l.s4 1983009808
    %v318 = vunpack.c.0.s8 %v317
    %v319 = vlaneseq
    %v320 = vshrl.u32 %v319, 7
    %v321 = vsub.s32 %v318, %v320
    %v322 = vrot.slane %v41, %v321
    %v323 = vcombine.high %v322, %v322
    %324 = vrot.lane.b32.xlu0 %v323, 96
    %v325 = vpop.permute.xlu0 %324
    %328 = vrot.lane.b32.xlu0 %v314, 32
    %v329 = vpop.permute.xlu0 %328
    %332 = vrot.lane.b32.xlu0 %v42, 36
    %v333 = vpop.permute.xlu0 %332
    %335 = vrot.lane.b32.xlu0 %v322, 56
    %v336 = vpop.permute.xlu0 %335
    %vm338 = vcmask 261120
    %v339 = vsel %vm338, %v325, %v329
    %vm340 = vcmask 392192
    %v341 = vsel %vm340, %v339, %v333
    %vm342 = vcmask 457728
    %v343 = vsel %vm342, %v341, %v336
    %vm344 = vcmask 719872
    %v345 = vsel %vm344, %v343, 1.0
    %v346 = vld [vmem:[#allocation2] sm:$0xff]
    %v347 = vld [vmem:[#allocation2 + $0x8] sm:$0xff]
    %v348 = vld [vmem:[#allocation2 + $0x10] sm:$0xff]
    %v349 = vld [vmem:[#allocation2 + $0x18] sm:$0xff]
    %v350 = vld [vmem:[#allocation2 + $0x20] sm:$0xff]
    %v351 = vld [vmem:[#allocation2 + $0x28] sm:$0xff]
    %v352 = vld [vmem:[#allocation2 + $0x30] sm:$0xff]
    %v353 = vld [vmem:[#allocation2 + $0x38] sm:$0xff]
    %v354 = vld [vmem:[#allocation2 + $0x40] sm:$0xff]
    %v355 = vld [vmem:[#allocation2 + $0x48] sm:$0xff]
    %v356 = vld [vmem:[#allocation2 + $0x50] sm:$0xff]
    %v357 = vld [vmem:[#allocation2 + $0x58] sm:$0x1]
    %vm358 = vcmask 728064
    %v360 = vsel %vm358, %v345, 0
    %v363 = vsel %vm170, %v357, 0
    %365 = vmatprep.subr.mxu0 0.0
    %366 = vmatpush1.msra.mxu0 0.0
    %367 = vmatprep.subr.mxu0 0.0
    %368 = vmatpush1.msra.mxu0 0.0
    %369 = vmatprep.subr.mxu0 0.0
    %370 = vmatpush1.msra.mxu0 0.0
    %371 = vmatprep.subr.mxu0 0.0
    %372 = vmatpush1.msra.mxu0 0.0
    %373 = vmatprep.subr.mxu0 0.0
    %374 = vmatpush1.msra.mxu0 %v363
    %375 = vmatprep.subr.mxu0 0.0
    %376 = vmatpush1.msra.mxu0 %v356
    %377 = vmatprep.subr.mxu0 0.0
    %378 = vmatpush1.msra.mxu0 %v355
    %379 = vmatprep.subr.mxu0 0.0
    %380 = vmatpush1.msra.mxu0 %v354
    %381 = vmatprep.subr.mxu0 0.0
    %382 = vmatpush1.msra.mxu0 %v353
    %383 = vmatprep.subr.mxu0 0.0
    %384 = vmatpush1.msra.mxu0 %v352
    %385 = vmatprep.subr.mxu0 0.0
    %386 = vmatpush1.msra.mxu0 %v351
    %387 = vmatprep.subr.mxu0 0.0
    %388 = vmatpush1.msra.mxu0 %v350
    %389 = vmatprep.subr.mxu0 0.0
    %390 = vmatpush1.msra.mxu0 %v349
    %391 = vmatprep.subr.mxu0 0.0
    %392 = vmatpush1.msra.mxu0 %v348
    %393 = vmatprep.subr.mxu0 0.0
    %394 = vmatpush1.msra.mxu0 %v347
    %395 = vmatprep.subr.mxu0 0.0
    %396 = vmatpush1.msra.mxu0 %v346
    %397 = vmatprep.subr.mxu0 0.0
    %398 = vmatpush2.msra.mxu0 0.0
    %399 = vmatprep.subr.mxu0 0.0
    %400 = vmatpush2.msra.mxu0 0.0
    %401 = vmatprep.subr.mxu0 0.0
    %402 = vmatpush2.msra.mxu0 0.0
    %403 = vmatprep.subr.mxu0 0.0
    %404 = vmatpush2.msra.mxu0 0.0
    %405 = vmatprep.subr.mxu0 0.0
    %406 = vmatpush2.msra.mxu0 0.0
    %407 = vmatprep.subr.mxu0 0.0
    %408 = vmatpush2.msra.mxu0 0.0
    %409 = vmatprep.subr.mxu0 0.0
    %410 = vmatpush2.msra.mxu0 0.0
    %411 = vmatprep.subr.mxu0 0.0
    %412 = vmatpush2.msra.mxu0 0.0
    %413 = vmatprep.subr.mxu0 0.0
    %414 = vmatpush2.msra.mxu0 0.0
    %415 = vmatprep.subr.mxu0 0.0
    %416 = vmatpush2.msra.mxu0 0.0
    %417 = vmatprep.subr.mxu0 0.0
    %418 = vmatpush2.msra.mxu0 0.0
    %419 = vmatprep.subr.mxu0 0.0
    %420 = vmatpush2.msra.mxu0 0.0
    %421 = vmatprep.subr.mxu0 0.0
    %422 = vmatpush2.msra.mxu0 0.0
    %423 = vmatprep.subr.mxu0 0.0
    %424 = vmatpush2.msra.mxu0 0.0
    %425 = vmatprep.subr.mxu0 0.0
    %426 = vmatpush2.msra.mxu0 0.0
    %427 = vmatprep.subr.mxu0 0.0
    %428 = vmatpush2.msra.mxu0 0.0
    %429 = vmatprep.mubr.f32.mxu0 0.0
    %430 = vmatmul.mubr.f32.gmra.mxu0 %v360
    %v431 = vpop.f32.mrf.mxu0
    %v432 = vadd.f32 0.0, %v431
    %v433 = vpop.f32.mrf.mxu0
    %434 = vdwg.mxu0
    %v435 = vxor.u32 %v432, 2147483648
    %v436 = vmul.f32 %v435, 1.442695
    %v437 = vpow.pop %v436
    %v438 = vadd.f32 %v437, 1.0
    %v439 = vrcp.pop %v438
    %v440 = vmul.f32 1.0, %v439
    %442 = vrot.lane.b32.xlu0 %v432, 32
    %v443 = vpop.permute.xlu0 %442
    %v445 = vmul.f32 %v440, %v443
    %447 = vrot.lane.b32.xlu0 %v445, 64
    %v448 = vpop.permute.xlu0 %447
    %v450 = vadd.f32 %v432, %v448
    %v451 = vtanh.pop %v450
    %v452 = vsub.f32 1.0, %v440
    %454 = vrot.lane.b32.xlu0 %v451, 96
    %v455 = vpop.permute.xlu0 %454
    %v457 = vmul.f32 %v452, %v455
    %458 = vrot.lane.b32.xlu0 %v322, 32
    %v459 = vpop.permute.xlu0 %458
    %v461 = vmul.f32 %v440, %v459
    %v462 = vadd.f32 %v457, %v461
    %463 = vrot.lane.b32.xlu0 %v323, 64
    %v464 = vpop.permute.xlu0 %463
    %vm466 = vcmask 130048
    %v467 = vsel %vm466, %v464, 1.0
    %v468 = vld [vmem:[%s5] sm:$0xff]
    %v469 = vld [vmem:[%s5 + $0x8] sm:$0xff]
    %v470 = vld [vmem:[%s5 + $0x10] sm:$0xff]
    %v471 = vld [vmem:[%s5 + $0x18] sm:$0xff]
    %v472 = vld [vmem:[%s5 + $0x20] sm:$0xff]
    %v473 = vld [vmem:[%s5 + $0x28] sm:$0xff]
    %v474 = vld [vmem:[%s5 + $0x30] sm:$0xff]
    %v475 = vld [vmem:[%s5 + $0x38] sm:$0xff]
    %v476 = vld [vmem:[%s5 + $0x40] sm:$0x1]
    %v477 = vld [vmem:[%s5 + $0x48] sm:$0x1]
    %v478 = vld [vmem:[%s5 + $0x50] sm:$0x1]
    %v479 = vld [vmem:[%s5 + $0x58] sm:$0x1]
    %481 = vrot.lane.b32.xlu0 %v462, 96
    %v482 = vpop.permute.xlu0 %481
    %v484 = vsel %vm338, %v482, 1.0
    %v485 = vld [vmem:[%s5 + $0x60] sm:$0xff]
    %v486 = vld [vmem:[%s5 + $0x68] sm:$0xff]
    %v487 = vld [vmem:[%s5 + $0x70] sm:$0xff]
    %v488 = vld [vmem:[%s5 + $0x78] sm:$0xff]
    %v489 = vld [vmem:[%s5 + $0x80] sm:$0xff]
    %v490 = vld [vmem:[%s5 + $0x88] sm:$0xff]
    %v491 = vld [vmem:[%s5 + $0x90] sm:$0xff]
    %v492 = vld [vmem:[%s5 + $0x98] sm:$0xff]
    %v493 = vld [vmem:[%s5 + $0xa0] sm:$0xff]
    %v494 = vld [vmem:[%s5 + $0xa8] sm:$0xff]
    %v495 = vld [vmem:[%s5 + $0xb0] sm:$0xff]
    %v496 = vld [vmem:[%s5 + $0xb8] sm:$0xff]
    %v497 = vld [vmem:[%s5 + $0xc0] sm:$0xff]
    %v498 = vld [vmem:[%s5 + $0xc8] sm:$0xff]
    %v499 = vld [vmem:[%s5 + $0xd0] sm:$0xff]
    %v500 = vld [vmem:[%s5 + $0xd8] sm:$0xff]
    %v501 = vld [vmem:[%s5 + $0xe0] sm:$0x1]
    %v502 = vld [vmem:[%s5 + $0xe8] sm:$0x1]
    %v503 = vld [vmem:[%s5 + $0xf0] sm:$0x1]
    %v504 = vld [vmem:[%s5 + $0xf8] sm:$0x1]
    %vm505 = vcmask 269312
    %v507 = vsel %vm505, %v484, 0
    %v510 = vsel %vm170, %v501, 0
    %v513 = vsel %vm170, %v502, 0
    %v516 = vsel %vm170, %v503, 0
    %v519 = vsel %vm170, %v504, 0
    %521 = vmatprep.subr.mxu0 0.0
    %522 = vmatpush1.msra.mxu0 0.0
    %523 = vmatprep.subr.mxu0 0.0
    %524 = vmatpush1.msra.mxu0 0.0
    %525 = vmatprep.subr.mxu0 0.0
    %526 = vmatpush1.msra.mxu0 0.0
    %527 = vmatprep.subr.mxu0 0.0
    %528 = vmatpush1.msra.mxu0 0.0
    %529 = vmatprep.subr.mxu0 0.0
    %530 = vmatpush1.msra.mxu0 0.0
    %531 = vmatprep.subr.mxu0 0.0
    %532 = vmatpush1.msra.mxu0 0.0
    %533 = vmatprep.subr.mxu0 0.0
    %534 = vmatpush1.msra.mxu0 0.0
    %535 = vmatprep.subr.mxu0 0.0
    %536 = vmatpush1.msra.mxu0 0.0
    %537 = vmatprep.subr.mxu0 0.0
    %538 = vmatpush1.msra.mxu0 0.0
    %539 = vmatprep.subr.mxu0 0.0
    %540 = vmatpush1.msra.mxu0 0.0
    %541 = vmatprep.subr.mxu0 0.0
    %542 = vmatpush1.msra.mxu0 0.0
    %543 = vmatprep.subr.mxu0 %v513
    %544 = vmatpush1.msra.mxu0 %v510
    %545 = vmatprep.subr.mxu0 %v498
    %546 = vmatpush1.msra.mxu0 %v497
    %547 = vmatprep.subr.mxu0 %v494
    %548 = vmatpush1.msra.mxu0 %v493
    %549 = vmatprep.subr.mxu0 %v490
    %550 = vmatpush1.msra.mxu0 %v489
    %551 = vmatprep.subr.mxu0 %v486
    %552 = vmatpush1.msra.mxu0 %v485
    %553 = vmatprep.subr.mxu0 0.0
    %554 = vmatpush2.msra.mxu0 0.0
    %555 = vmatprep.subr.mxu0 0.0
    %556 = vmatpush2.msra.mxu0 0.0
    %557 = vmatprep.subr.mxu0 0.0
    %558 = vmatpush2.msra.mxu0 0.0
    %559 = vmatprep.subr.mxu0 0.0
    %560 = vmatpush2.msra.mxu0 0.0
    %561 = vmatprep.subr.mxu0 0.0
    %562 = vmatpush2.msra.mxu0 0.0
    %563 = vmatprep.subr.mxu0 0.0
    %564 = vmatpush2.msra.mxu0 0.0
    %565 = vmatprep.subr.mxu0 0.0
    %566 = vmatpush2.msra.mxu0 0.0
    %567 = vmatprep.subr.mxu0 0.0
    %568 = vmatpush2.msra.mxu0 0.0
    %569 = vmatprep.subr.mxu0 0.0
    %570 = vmatpush2.msra.mxu0 0.0
    %571 = vmatprep.subr.mxu0 0.0
    %572 = vmatpush2.msra.mxu0 0.0
    %573 = vmatprep.subr.mxu0 0.0
    %574 = vmatpush2.msra.mxu0 0.0
    %575 = vmatprep.subr.mxu0 0.0
    %576 = vmatpush2.msra.mxu0 0.0
    %577 = vmatprep.subr.mxu0 0.0
    %578 = vmatpush2.msra.mxu0 0.0
    %579 = vmatprep.subr.mxu0 0.0
    %580 = vmatpush2.msra.mxu0 0.0
    %581 = vmatprep.subr.mxu0 0.0
    %582 = vmatpush2.msra.mxu0 0.0
    %583 = vmatprep.subr.mxu0 0.0
    %584 = vmatpush2.msra.mxu0 0.0
    %585 = vmatprep.mubr.f32.mxu0 0.0
    %586 = vmatmul.mubr.f32.gmra.mxu0 %v507
    %v587 = vpop.f32.mrf.mxu0
    %v588 = vadd.f32 0.0, %v587
    %v589 = vpop.f32.mrf.mxu0
    %v590 = vadd.f32 0.0, %v589
    %591 = vdwg.mxu0
    %592 = vmatprep.subr.mxu0 0.0
    %593 = vmatpush1.msra.mxu0 0.0
    %594 = vmatprep.subr.mxu0 0.0
    %595 = vmatpush1.msra.mxu0 0.0
    %596 = vmatprep.subr.mxu0 0.0
    %597 = vmatpush1.msra.mxu0 0.0
    %598 = vmatprep.subr.mxu0 0.0
    %599 = vmatpush1.msra.mxu0 0.0
    %600 = vmatprep.subr.mxu0 0.0
    %601 = vmatpush1.msra.mxu0 0.0
    %602 = vmatprep.subr.mxu0 0.0
    %603 = vmatpush1.msra.mxu0 0.0
    %604 = vmatprep.subr.mxu0 0.0
    %605 = vmatpush1.msra.mxu0 0.0
    %606 = vmatprep.subr.mxu0 0.0
    %607 = vmatpush1.msra.mxu0 0.0
    %608 = vmatprep.subr.mxu0 0.0
    %609 = vmatpush1.msra.mxu0 0.0
    %610 = vmatprep.subr.mxu0 0.0
    %611 = vmatpush1.msra.mxu0 0.0
    %612 = vmatprep.subr.mxu0 0.0
    %613 = vmatpush1.msra.mxu0 0.0
    %614 = vmatprep.subr.mxu0 %v519
    %615 = vmatpush1.msra.mxu0 %v516
    %616 = vmatprep.subr.mxu0 %v500
    %617 = vmatpush1.msra.mxu0 %v499
    %618 = vmatprep.subr.mxu0 %v496
    %619 = vmatpush1.msra.mxu0 %v495
    %620 = vmatprep.subr.mxu0 %v492
    %621 = vmatpush1.msra.mxu0 %v491
    %622 = vmatprep.subr.mxu0 %v488
    %623 = vmatpush1.msra.mxu0 %v487
    %624 = vmatprep.subr.mxu0 0.0
    %625 = vmatpush2.msra.mxu0 0.0
    %626 = vmatprep.subr.mxu0 0.0
    %627 = vmatpush2.msra.mxu0 0.0
    %628 = vmatprep.subr.mxu0 0.0
    %629 = vmatpush2.msra.mxu0 0.0
    %630 = vmatprep.subr.mxu0 0.0
    %631 = vmatpush2.msra.mxu0 0.0
    %632 = vmatprep.subr.mxu0 0.0
    %633 = vmatpush2.msra.mxu0 0.0
    %634 = vmatprep.subr.mxu0 0.0
    %635 = vmatpush2.msra.mxu0 0.0
    %636 = vmatprep.subr.mxu0 0.0
    %637 = vmatpush2.msra.mxu0 0.0
    %638 = vmatprep.subr.mxu0 0.0
    %639 = vmatpush2.msra.mxu0 0.0
    %640 = vmatprep.subr.mxu0 0.0
    %641 = vmatpush2.msra.mxu0 0.0
    %642 = vmatprep.subr.mxu0 0.0
    %643 = vmatpush2.msra.mxu0 0.0
    %644 = vmatprep.subr.mxu0 0.0
    %645 = vmatpush2.msra.mxu0 0.0
    %646 = vmatprep.subr.mxu0 0.0
    %647 = vmatpush2.msra.mxu0 0.0
    %648 = vmatprep.subr.mxu0 0.0
    %649 = vmatpush2.msra.mxu0 0.0
    %650 = vmatprep.subr.mxu0 0.0
    %651 = vmatpush2.msra.mxu0 0.0
    %652 = vmatprep.subr.mxu0 0.0
    %653 = vmatpush2.msra.mxu0 0.0
    %654 = vmatprep.subr.mxu0 0.0
    %655 = vmatpush2.msra.mxu0 0.0
    %656 = vmatprep.mubr.f32.mxu0 0.0
    %657 = vmatmul.mubr.f32.gmra.mxu0 %v507
    %v658 = vpop.f32.mrf.mxu0
    %v659 = vadd.f32 0.0, %v658
    %v660 = vpop.f32.mrf.mxu0
    %v661 = vadd.f32 0.0, %v660
    %662 = vdwg.mxu0
    %vm663 = vcmask 138240
    %v665 = vsel %vm663, %v467, 0
    %v668 = vsel %vm170, %v476, 0
    %v671 = vsel %vm170, %v477, 0
    %v674 = vsel %vm170, %v478, 0
    %v677 = vsel %vm170, %v479, 0
    %679 = vmatprep.subr.mxu0 0.0
    %680 = vmatpush1.msra.mxu0 0.0
    %681 = vmatprep.subr.mxu0 0.0
    %682 = vmatpush1.msra.mxu0 0.0
    %683 = vmatprep.subr.mxu0 0.0
    %684 = vmatpush1.msra.mxu0 0.0
    %685 = vmatprep.subr.mxu0 0.0
    %686 = vmatpush1.msra.mxu0 0.0
    %687 = vmatprep.subr.mxu0 0.0
    %688 = vmatpush1.msra.mxu0 0.0
    %689 = vmatprep.subr.mxu0 0.0
    %690 = vmatpush1.msra.mxu0 0.0
    %691 = vmatprep.subr.mxu0 0.0
    %692 = vmatpush1.msra.mxu0 0.0
    %693 = vmatprep.subr.mxu0 0.0
    %694 = vmatpush1.msra.mxu0 0.0
    %695 = vmatprep.subr.mxu0 0.0
    %696 = vmatpush1.msra.mxu0 0.0
    %697 = vmatprep.subr.mxu0 0.0
    %698 = vmatpush1.msra.mxu0 0.0
    %699 = vmatprep.subr.mxu0 0.0
    %700 = vmatpush1.msra.mxu0 0.0
    %701 = vmatprep.subr.mxu0 0.0
    %702 = vmatpush1.msra.mxu0 0.0
    %703 = vmatprep.subr.mxu0 0.0
    %704 = vmatpush1.msra.mxu0 0.0
    %705 = vmatprep.subr.mxu0 %v671
    %706 = vmatpush1.msra.mxu0 %v668
    %707 = vmatprep.subr.mxu0 %v473
    %708 = vmatpush1.msra.mxu0 %v472
    %709 = vmatprep.subr.mxu0 %v469
    %710 = vmatpush1.msra.mxu0 %v468
    %711 = vmatprep.subr.mxu0 0.0
    %712 = vmatpush2.msra.mxu0 0.0
    %713 = vmatprep.subr.mxu0 0.0
    %714 = vmatpush2.msra.mxu0 0.0
    %715 = vmatprep.subr.mxu0 0.0
    %716 = vmatpush2.msra.mxu0 0.0
    %717 = vmatprep.subr.mxu0 0.0
    %718 = vmatpush2.msra.mxu0 0.0
    %719 = vmatprep.subr.mxu0 0.0
    %720 = vmatpush2.msra.mxu0 0.0
    %721 = vmatprep.subr.mxu0 0.0
    %722 = vmatpush2.msra.mxu0 0.0
    %723 = vmatprep.subr.mxu0 0.0
    %724 = vmatpush2.msra.mxu0 0.0
    %725 = vmatprep.subr.mxu0 0.0
    %726 = vmatpush2.msra.mxu0 0.0
    %727 = vmatprep.subr.mxu0 0.0
    %728 = vmatpush2.msra.mxu0 0.0
    %729 = vmatprep.subr.mxu0 0.0
    %730 = vmatpush2.msra.mxu0 0.0
    %731 = vmatprep.subr.mxu0 0.0
    %732 = vmatpush2.msra.mxu0 0.0
    %733 = vmatprep.subr.mxu0 0.0
    %734 = vmatpush2.msra.mxu0 0.0
    %735 = vmatprep.subr.mxu0 0.0
    %736 = vmatpush2.msra.mxu0 0.0
    %737 = vmatprep.subr.mxu0 0.0
    %738 = vmatpush2.msra.mxu0 0.0
    %739 = vmatprep.subr.mxu0 0.0
    %740 = vmatpush2.msra.mxu0 0.0
    %741 = vmatprep.subr.mxu0 0.0
    %742 = vmatpush2.msra.mxu0 0.0
    %743 = vmatprep.mubr.f32.mxu0 0.0
    %744 = vmatmul.mubr.f32.gmra.mxu0 %v665
    %v745 = vpop.f32.mrf.mxu0
    %v746 = vadd.f32 %v588, %v745
    %v747 = vpop.f32.mrf.mxu0
    %v748 = vadd.f32 %v590, %v747
    %749 = vdwg.mxu0
    %750 = vmatprep.subr.mxu0 0.0
    %751 = vmatpush1.msra.mxu0 0.0
    %752 = vmatprep.subr.mxu0 0.0
    %753 = vmatpush1.msra.mxu0 0.0
    %754 = vmatprep.subr.mxu0 0.0
    %755 = vmatpush1.msra.mxu0 0.0
    %756 = vmatprep.subr.mxu0 0.0
    %757 = vmatpush1.msra.mxu0 0.0
    %758 = vmatprep.subr.mxu0 0.0
    %759 = vmatpush1.msra.mxu0 0.0
    %760 = vmatprep.subr.mxu0 0.0
    %761 = vmatpush1.msra.mxu0 0.0
    %762 = vmatprep.subr.mxu0 0.0
    %763 = vmatpush1.msra.mxu0 0.0
    %764 = vmatprep.subr.mxu0 0.0
    %765 = vmatpush1.msra.mxu0 0.0
    %766 = vmatprep.subr.mxu0 0.0
    %767 = vmatpush1.msra.mxu0 0.0
    %768 = vmatprep.subr.mxu0 0.0
    %769 = vmatpush1.msra.mxu0 0.0
    %770 = vmatprep.subr.mxu0 0.0
    %771 = vmatpush1.msra.mxu0 0.0
    %772 = vmatprep.subr.mxu0 0.0
    %773 = vmatpush1.msra.mxu0 0.0
    %774 = vmatprep.subr.mxu0 0.0
    %775 = vmatpush1.msra.mxu0 0.0
    %776 = vmatprep.subr.mxu0 %v677
    %777 = vmatpush1.msra.mxu0 %v674
    %778 = vmatprep.subr.mxu0 %v475
    %779 = vmatpush1.msra.mxu0 %v474
    %780 = vmatprep.subr.mxu0 %v471
    %781 = vmatpush1.msra.mxu0 %v470
    %782 = vmatprep.subr.mxu0 0.0
    %783 = vmatpush2.msra.mxu0 0.0
    %784 = vmatprep.subr.mxu0 0.0
    %785 = vmatpush2.msra.mxu0 0.0
    %786 = vmatprep.subr.mxu0 0.0
    %787 = vmatpush2.msra.mxu0 0.0
    %788 = vmatprep.subr.mxu0 0.0
    %789 = vmatpush2.msra.mxu0 0.0
    %790 = vmatprep.subr.mxu0 0.0
    %791 = vmatpush2.msra.mxu0 0.0
    %792 = vmatprep.subr.mxu0 0.0
    %793 = vmatpush2.msra.mxu0 0.0
    %794 = vmatprep.subr.mxu0 0.0
    %795 = vmatpush2.msra.mxu0 0.0
    %796 = vmatprep.subr.mxu0 0.0
    %797 = vmatpush2.msra.mxu0 0.0
    %798 = vmatprep.subr.mxu0 0.0
    %799 = vmatpush2.msra.mxu0 0.0
    %800 = vmatprep.subr.mxu0 0.0
    %801 = vmatpush2.msra.mxu0 0.0
    %802 = vmatprep.subr.mxu0 0.0
    %803 = vmatpush2.msra.mxu0 0.0
    %804 = vmatprep.subr.mxu0 0.0
    %805 = vmatpush2.msra.mxu0 0.0
    %806 = vmatprep.subr.mxu0 0.0
    %807 = vmatpush2.msra.mxu0 0.0
    %808 = vmatprep.subr.mxu0 0.0
    %809 = vmatpush2.msra.mxu0 0.0
    %810 = vmatprep.subr.mxu0 0.0
    %811 = vmatpush2.msra.mxu0 0.0
    %812 = vmatprep.subr.mxu0 0.0
    %813 = vmatpush2.msra.mxu0 0.0
    %814 = vmatprep.mubr.f32.mxu0 0.0
    %815 = vmatmul.mubr.f32.gmra.mxu0 %v665
    %v816 = vpop.f32.mrf.mxu0
    %v817 = vadd.f32 %v659, %v816
    %v818 = vpop.f32.mrf.mxu0
    %v819 = vadd.f32 %v661, %v818
    %820 = vdwg.mxu0
    %v821 = vld [vmem:[%s1] sm:$0xff]
    %v823 = vcombine.high %v821, %v821
    %v825 = vunpack.c.l.s4 1983009808
    %v826 = vunpack.c.0.s8 %v825
    %v827 = vlaneseq
    %v828 = vshrl.u32 %v827, 7
    %v829 = vsub.s32 %v826, %v828
    %v830 = vrot.slane %v821, %v829
    %v832 = vunpack.c.l.s4 1983009808
    %v833 = vunpack.c.0.s8 %v832
    %v834 = vlaneseq
    %v835 = vshrl.u32 %v834, 7
    %v836 = vsub.s32 %v833, %v835
    %v837 = vrot.slane %v823, %v836
    %v838 = vcombine.high %v830, %v830
    %v839 = vcombine.high %v837, %v837
    %v844 = vadd.f32 %v746, %v830
    %v845 = vadd.f32 %v748, %v838
    %v846 = vadd.f32 %v817, %v837
    %v847 = vadd.f32 %v819, %v839
    %v848 = vtanh.pop %v844
    %v849 = vtanh.pop %v845
    %v850 = vtanh.pop %v846
    %v851 = vtanh.pop %v847
    %v852 = vld [vmem:[%s6] sm:$0xff]
    %v853 = vld [vmem:[%s6 + $0x8] sm:$0xff]
    %v854 = vld [vmem:[%s6 + $0x10] sm:$0xff]
    %v855 = vld [vmem:[%s6 + $0x18] sm:$0xff]
    %v856 = vld [vmem:[%s6 + $0x20] sm:$0xff]
    %v857 = vld [vmem:[%s6 + $0x28] sm:$0xff]
    %v858 = vld [vmem:[%s6 + $0x30] sm:$0xff]
    %v859 = vld [vmem:[%s6 + $0x38] sm:$0xff]
    %v860 = vld [vmem:[%s6 + $0x40] sm:$0xff]
    %v861 = vld [vmem:[%s6 + $0x48] sm:$0xff]
    %v862 = vld [vmem:[%s6 + $0x50] sm:$0xff]
    %v863 = vld [vmem:[%s6 + $0x58] sm:$0xff]
    %v864 = vld [vmem:[%s6 + $0x60] sm:$0xff]
    %v865 = vld [vmem:[%s6 + $0x68] sm:$0xff]
    %v866 = vld [vmem:[%s6 + $0x70] sm:$0xff]
    %v867 = vld [vmem:[%s6 + $0x78] sm:$0xff]
    %v868 = vld [vmem:[%s6 + $0x80] sm:$0xff]
    %v869 = vld [vmem:[%s6 + $0x88] sm:$0xff]
    %v870 = vld [vmem:[%s6 + $0x90] sm:$0xff]
    %v871 = vld [vmem:[%s6 + $0x98] sm:$0xff]
    %v872 = vld [vmem:[%s6 + $0xa0] sm:$0xff]
    %v873 = vld [vmem:[%s6 + $0xa8] sm:$0xff]
    %v874 = vld [vmem:[%s6 + $0xb0] sm:$0xff]
    %v875 = vld [vmem:[%s6 + $0xb8] sm:$0xff]
    %v876 = vld [vmem:[%s6 + $0xc0] sm:$0xff]
    %v877 = vld [vmem:[%s6 + $0xc8] sm:$0xff]
    %v878 = vld [vmem:[%s6 + $0xd0] sm:$0xff]
    %v879 = vld [vmem:[%s6 + $0xd8] sm:$0xff]
    %v880 = vld [vmem:[%s6 + $0xe0] sm:$0xff]
    %v881 = vld [vmem:[%s6 + $0xe8] sm:$0xff]
    %v882 = vld [vmem:[%s6 + $0xf0] sm:$0xff]
    %v883 = vld [vmem:[%s6 + $0xf8] sm:$0xff]
    %v884 = vld [vmem:[%s6 + $0x100] sm:$0xff]
    %v885 = vld [vmem:[%s6 + $0x108] sm:$0xff]
    %v886 = vld [vmem:[%s6 + $0x110] sm:$0xff]
    %v887 = vld [vmem:[%s6 + $0x118] sm:$0xff]
    %v888 = vld [vmem:[%s6 + $0x120] sm:$0xff]
    %v889 = vld [vmem:[%s6 + $0x128] sm:$0xff]
    %v890 = vld [vmem:[%s6 + $0x130] sm:$0xff]
    %v891 = vld [vmem:[%s6 + $0x138] sm:$0xff]
    %v892 = vld [vmem:[%s6 + $0x140] sm:$0xff]
    %v893 = vld [vmem:[%s6 + $0x148] sm:$0xff]
    %v894 = vld [vmem:[%s6 + $0x150] sm:$0xff]
    %v895 = vld [vmem:[%s6 + $0x158] sm:$0xff]
    %v896 = vld [vmem:[%s6 + $0x160] sm:$0xff]
    %v897 = vld [vmem:[%s6 + $0x168] sm:$0xff]
    %v898 = vld [vmem:[%s6 + $0x170] sm:$0xff]
    %v899 = vld [vmem:[%s6 + $0x178] sm:$0xff]
    %v900 = vld [vmem:[%s6 + $0x180] sm:$0xff]
    %v901 = vld [vmem:[%s6 + $0x188] sm:$0xff]
    %v902 = vld [vmem:[%s6 + $0x190] sm:$0xff]
    %v903 = vld [vmem:[%s6 + $0x198] sm:$0xff]
    %v904 = vld [vmem:[%s6 + $0x1a0] sm:$0xff]
    %v905 = vld [vmem:[%s6 + $0x1a8] sm:$0xff]
    %v906 = vld [vmem:[%s6 + $0x1b0] sm:$0xff]
    %v907 = vld [vmem:[%s6 + $0x1b8] sm:$0xff]
    %v908 = vld [vmem:[%s6 + $0x1c0] sm:$0xff]
    %v909 = vld [vmem:[%s6 + $0x1c8] sm:$0xff]
    %v910 = vld [vmem:[%s6 + $0x1d0] sm:$0xff]
    %v911 = vld [vmem:[%s6 + $0x1d8] sm:$0xff]
    %v912 = vld [vmem:[%s6 + $0x1e0] sm:$0xff]
    %v913 = vld [vmem:[%s6 + $0x1e8] sm:$0xff]
    %v914 = vld [vmem:[%s6 + $0x1f0] sm:$0xff]
    %v915 = vld [vmem:[%s6 + $0x1f8] sm:$0xff]
    %916 = vmatprep.subr.mxu0 0.0
    %917 = vmatpush1.msra.mxu0 %v867
    %918 = vmatprep.subr.mxu0 0.0
    %919 = vmatpush1.msra.mxu0 %v866
    %920 = vmatprep.subr.mxu0 0.0
    %921 = vmatpush1.msra.mxu0 %v865
    %922 = vmatprep.subr.mxu0 0.0
    %923 = vmatpush1.msra.mxu0 %v864
    %924 = vmatprep.subr.mxu0 0.0
    %925 = vmatpush1.msra.mxu0 %v863
    %926 = vmatprep.subr.mxu0 0.0
    %927 = vmatpush1.msra.mxu0 %v862
    %928 = vmatprep.subr.mxu0 0.0
    %929 = vmatpush1.msra.mxu0 %v861
    %930 = vmatprep.subr.mxu0 0.0
    %931 = vmatpush1.msra.mxu0 %v860
    %932 = vmatprep.subr.mxu0 0.0
    %933 = vmatpush1.msra.mxu0 %v859
    %934 = vmatprep.subr.mxu0 0.0
    %935 = vmatpush1.msra.mxu0 %v858
    %936 = vmatprep.subr.mxu0 0.0
    %937 = vmatpush1.msra.mxu0 %v857
    %938 = vmatprep.subr.mxu0 0.0
    %939 = vmatpush1.msra.mxu0 %v856
    %940 = vmatprep.subr.mxu0 0.0
    %941 = vmatpush1.msra.mxu0 %v855
    %942 = vmatprep.subr.mxu0 0.0
    %943 = vmatpush1.msra.mxu0 %v854
    %944 = vmatprep.subr.mxu0 0.0
    %945 = vmatpush1.msra.mxu0 %v853
    %946 = vmatprep.subr.mxu0 0.0
    %947 = vmatpush1.msra.mxu0 %v852
    %948 = vmatprep.subr.mxu0 0.0
    %949 = vmatpush2.msra.mxu0 %v883
    %950 = vmatprep.subr.mxu0 0.0
    %951 = vmatpush2.msra.mxu0 %v882
    %952 = vmatprep.subr.mxu0 0.0
    %953 = vmatpush2.msra.mxu0 %v881
    %954 = vmatprep.subr.mxu0 0.0
    %955 = vmatpush2.msra.mxu0 %v880
    %956 = vmatprep.subr.mxu0 0.0
    %957 = vmatpush2.msra.mxu0 %v879
    %958 = vmatprep.subr.mxu0 0.0
    %959 = vmatpush2.msra.mxu0 %v878
    %960 = vmatprep.subr.mxu0 0.0
    %961 = vmatpush2.msra.mxu0 %v877
    %962 = vmatprep.subr.mxu0 0.0
    %963 = vmatpush2.msra.mxu0 %v876
    %964 = vmatprep.subr.mxu0 0.0
    %965 = vmatpush2.msra.mxu0 %v875
    %966 = vmatprep.subr.mxu0 0.0
    %967 = vmatpush2.msra.mxu0 %v874
    %968 = vmatprep.subr.mxu0 0.0
    %969 = vmatpush2.msra.mxu0 %v873
    %970 = vmatprep.subr.mxu0 0.0
    %971 = vmatpush2.msra.mxu0 %v872
    %972 = vmatprep.subr.mxu0 0.0
    %973 = vmatpush2.msra.mxu0 %v871
    %974 = vmatprep.subr.mxu0 0.0
    %975 = vmatpush2.msra.mxu0 %v870
    %976 = vmatprep.subr.mxu0 0.0
    %977 = vmatpush2.msra.mxu0 %v869
    %978 = vmatprep.subr.mxu0 0.0
    %979 = vmatpush2.msra.mxu0 %v868
    %980 = vmatprep.mubr.f32.mxu0 %v849
    %981 = vmatmul.mubr.f32.gmra.mxu0 %v848
    %v982 = vpop.f32.mrf.mxu0
    %v983 = vadd.f32 0.0, %v982
    %v984 = vpop.f32.mrf.mxu0
    %985 = vdwg.mxu0
    %986 = vmatprep.subr.mxu0 0.0
    %987 = vmatpush1.msra.mxu0 %v899
    %988 = vmatprep.subr.mxu0 0.0
    %989 = vmatpush1.msra.mxu0 %v898
    %990 = vmatprep.subr.mxu0 0.0
    %991 = vmatpush1.msra.mxu0 %v897
    %992 = vmatprep.subr.mxu0 0.0
    %993 = vmatpush1.msra.mxu0 %v896
    %994 = vmatprep.subr.mxu0 0.0
    %995 = vmatpush1.msra.mxu0 %v895
    %996 = vmatprep.subr.mxu0 0.0
    %997 = vmatpush1.msra.mxu0 %v894
    %998 = vmatprep.subr.mxu0 0.0
    %999 = vmatpush1.msra.mxu0 %v893
    %1000 = vmatprep.subr.mxu0 0.0
    %1001 = vmatpush1.msra.mxu0 %v892
    %1002 = vmatprep.subr.mxu0 0.0
    %1003 = vmatpush1.msra.mxu0 %v891
    %1004 = vmatprep.subr.mxu0 0.0
    %1005 = vmatpush1.msra.mxu0 %v890
    %1006 = vmatprep.subr.mxu0 0.0
    %1007 = vmatpush1.msra.mxu0 %v889
    %1008 = vmatprep.subr.mxu0 0.0
    %1009 = vmatpush1.msra.mxu0 %v888
    %1010 = vmatprep.subr.mxu0 0.0
    %1011 = vmatpush1.msra.mxu0 %v887
    %1012 = vmatprep.subr.mxu0 0.0
    %1013 = vmatpush1.msra.mxu0 %v886
    %1014 = vmatprep.subr.mxu0 0.0
    %1015 = vmatpush1.msra.mxu0 %v885
    %1016 = vmatprep.subr.mxu0 0.0
    %1017 = vmatpush1.msra.mxu0 %v884
    %1018 = vmatprep.subr.mxu0 0.0
    %1019 = vmatpush2.msra.mxu0 %v915
    %1020 = vmatprep.subr.mxu0 0.0
    %1021 = vmatpush2.msra.mxu0 %v914
    %1022 = vmatprep.subr.mxu0 0.0
    %1023 = vmatpush2.msra.mxu0 %v913
    %1024 = vmatprep.subr.mxu0 0.0
    %1025 = vmatpush2.msra.mxu0 %v912
    %1026 = vmatprep.subr.mxu0 0.0
    %1027 = vmatpush2.msra.mxu0 %v911
    %1028 = vmatprep.subr.mxu0 0.0
    %1029 = vmatpush2.msra.mxu0 %v910
    %1030 = vmatprep.subr.mxu0 0.0
    %1031 = vmatpush2.msra.mxu0 %v909
    %1032 = vmatprep.subr.mxu0 0.0
    %1033 = vmatpush2.msra.mxu0 %v908
    %1034 = vmatprep.subr.mxu0 0.0
    %1035 = vmatpush2.msra.mxu0 %v907
    %1036 = vmatprep.subr.mxu0 0.0
    %1037 = vmatpush2.msra.mxu0 %v906
    %1038 = vmatprep.subr.mxu0 0.0
    %1039 = vmatpush2.msra.mxu0 %v905
    %1040 = vmatprep.subr.mxu0 0.0
    %1041 = vmatpush2.msra.mxu0 %v904
    %1042 = vmatprep.subr.mxu0 0.0
    %1043 = vmatpush2.msra.mxu0 %v903
    %1044 = vmatprep.subr.mxu0 0.0
    %1045 = vmatpush2.msra.mxu0 %v902
    %1046 = vmatprep.subr.mxu0 0.0
    %1047 = vmatpush2.msra.mxu0 %v901
    %1048 = vmatprep.subr.mxu0 0.0
    %1049 = vmatpush2.msra.mxu0 %v900
    %1050 = vmatprep.mubr.f32.mxu0 %v851
    %1051 = vmatmul.mubr.f32.gmra.mxu0 %v850
    %v1052 = vpop.f32.mrf.mxu0
    %v1053 = vadd.f32 %v983, %v1052
    %v1054 = vpop.f32.mrf.mxu0
    %1055 = vdwg.mxu0
    %1056 = vrot.lane.b32.xlu0 %v41, 48
    %v1057 = vpop.permute.xlu0 %1056
    %v1058 = vrot.slane %v1057, 2
    %vm1060 = vcmp.gt.f32.partialorder %v1058, 0.5
    %v1061 = vsel %vm1060, %v1053, -1e+30
    %vm1062 = vcmask 123904
    %v1063 = vsel %vm1062, %v1061, -inf
    %1064 = vmax.xlane.f32.xlu0 %v1063
    %v1065 = vpop.xlane.xlu0 %1064
    %v1066 = vsub.f32 %v1061, %v1065
    %v1067 = vmul.f32 %v1066, 1.442695
    %v1068 = vpow.pop %v1067
    %v1069 = vmul.f32 %v1068, %v1058
    %v1070 = vsel %vm1062, %v1069, 0.0
    %1071 = vadd.xlane.f32.xlu0 %v1070
    %v1072 = vpop.xlane.xlu0 %1071
    %v1073 = vrcp.pop %v1072
    %v1074 = vmul.f32 %v1069, %v1073
    %1075 = vrot.lane.b32.xlu0 %v41, 64
    %v1076 = vpop.permute.xlu0 %1075
    %v1077 = vrot.slane %v1076, 2
    %v1079 = vadd.f32 %v1077, %v1074
    %v1080 = vlaneseq
    %v1081 = vshrl.u32 %v1080, 7
    %v1082 = vsub.s32 0, %v1081
    %v1083 = vrot.slane %v1074, %v1082
    %1085 = vbcast.lane.b32.xlu0 %v1083, 256
    %v1086 = vpop.permute.xlu0 %1085
    %s1088 = sor.u32 256, 8
    %1089 = vbcast.lane.b32.xlu0 %v1083, %s1088
    %v1090 = vpop.permute.xlu0 %1089
    %v1091 = vlaneseq
    %v1092 = vshrl.u32 %v1091, 7
    %v1093 = vsub.s32 1, %v1092
    %v1094 = vrot.slane %v1074, %v1093
    %1096 = vbcast.lane.b32.xlu0 %v1094, 256
    %v1097 = vpop.permute.xlu0 %1096
    %s1099 = sor.u32 256, 8
    %1100 = vbcast.lane.b32.xlu0 %v1094, %s1099
    %v1101 = vpop.permute.xlu0 %1100
    %v1102 = vld [vmem:[%s0] sm:$0xff]
    %v1103 = vld [vmem:[%s0 + $0x8] sm:$0xff]
    %v1104 = vld [vmem:[%s0 + $0x10] sm:$0xff]
    %v1105 = vld [vmem:[%s0 + $0x18] sm:$0xff]
    %v1106 = vmul.f32 %v1086, %v1102
    %v1107 = vmul.f32 %v1090, %v1103
    %v1108 = vmul.f32 %v1097, %v1104
    %v1109 = vmul.f32 %v1101, %v1105
    %v1110 = vsel %vm338, %v1106, 0.0
    %v1111 = vsel %vm338, %v1107, 0.0
    %v1112 = vadd.f32 %v1110, %v1111
    %v1113 = vrot.slane %v1112, 4
    %v1114 = vadd.f32 %v1112, %v1113
    %v1115 = vrot.slane %v1114, 2
    %v1116 = vadd.f32 %v1114, %v1115
    %v1117 = vrot.slane %v1116, 1
    %v1118 = vadd.f32 %v1116, %v1117
    %v1119 = vsel %vm338, %v1108, 0.0
    %v1120 = vsel %vm338, %v1109, 0.0
    %v1121 = vadd.f32 %v1119, %v1120
    %v1122 = vrot.slane %v1121, 4
    %v1123 = vadd.f32 %v1121, %v1122
    %v1124 = vrot.slane %v1123, 2
    %v1125 = vadd.f32 %v1123, %v1124
    %v1126 = vrot.slane %v1125, 1
    %v1127 = vadd.f32 %v1125, %v1126
    %vm1130 = vcmask 1041409
    %v1131 = vsel %vm1130, %v1127, %v1118
    %1133 = vrot.lane.b32.xlu0 %v42, 56
    %v1134 = vpop.permute.xlu0 %1133
    %v1136 = vsel %vm338, %v1131, %v462
    %vm1137 = vcmask 523264
    %v1138 = vsel %vm1137, %v1136, %v1134
    %vm1139 = vcmask 621568
    %v1140 = vsel %vm1139, %v1138, 1.0
    %v1141 = vld [vmem:[#allocation2 + $0xf0] sm:$0xff]
    %v1142 = vld [vmem:[#allocation2 + $0xf8] sm:$0xff]
    %v1143 = vld [vmem:[#allocation2 + $0x100] sm:$0xff]
    %v1144 = vld [vmem:[#allocation2 + $0x108] sm:$0xff]
    %v1145 = vld [vmem:[#allocation2 + $0x110] sm:$0xff]
    %v1146 = vld [vmem:[#allocation2 + $0x118] sm:$0xff]
    %v1147 = vld [vmem:[#allocation2 + $0x120] sm:$0xff]
    %v1148 = vld [vmem:[#allocation2 + $0x128] sm:$0xff]
    %v1149 = vld [vmem:[#allocation2 + $0x130] sm:$0xff]
    %v1150 = vld [vmem:[#allocation2 + $0x138] sm:$0x1f]
    %vm1151 = vcmask 629760
    %v1153 = vsel %vm1151, %v1140, 0
    %v1156 = vsel %vm53, %v1150, 0
    %1158 = vmatprep.subr.mxu0 0.0
    %1159 = vmatpush1.msra.mxu0 0.0
    %1160 = vmatprep.subr.mxu0 0.0
    %1161 = vmatpush1.msra.mxu0 0.0
    %1162 = vmatprep.subr.mxu0 0.0
    %1163 = vmatpush1.msra.mxu0 0.0
    %1164 = vmatprep.subr.mxu0 0.0
    %1165 = vmatpush1.msra.mxu0 0.0
    %1166 = vmatprep.subr.mxu0 0.0
    %1167 = vmatpush1.msra.mxu0 0.0
    %1168 = vmatprep.subr.mxu0 0.0
    %1169 = vmatpush1.msra.mxu0 0.0
    %1170 = vmatprep.subr.mxu0 0.0
    %1171 = vmatpush1.msra.mxu0 %v1156
    %1172 = vmatprep.subr.mxu0 0.0
    %1173 = vmatpush1.msra.mxu0 %v1149
    %1174 = vmatprep.subr.mxu0 0.0
    %1175 = vmatpush1.msra.mxu0 %v1148
    %1176 = vmatprep.subr.mxu0 0.0
    %1177 = vmatpush1.msra.mxu0 %v1147
    %1178 = vmatprep.subr.mxu0 0.0
    %1179 = vmatpush1.msra.mxu0 %v1146
    %1180 = vmatprep.subr.mxu0 0.0
    %1181 = vmatpush1.msra.mxu0 %v1145
    %1182 = vmatprep.subr.mxu0 0.0
    %1183 = vmatpush1.msra.mxu0 %v1144
    %1184 = vmatprep.subr.mxu0 0.0
    %1185 = vmatpush1.msra.mxu0 %v1143
    %1186 = vmatprep.subr.mxu0 0.0
    %1187 = vmatpush1.msra.mxu0 %v1142
    %1188 = vmatprep.subr.mxu0 0.0
    %1189 = vmatpush1.msra.mxu0 %v1141
    %1190 = vmatprep.subr.mxu0 0.0
    %1191 = vmatpush2.msra.mxu0 0.0
    %1192 = vmatprep.subr.mxu0 0.0
    %1193 = vmatpush2.msra.mxu0 0.0
    %1194 = vmatprep.subr.mxu0 0.0
    %1195 = vmatpush2.msra.mxu0 0.0
    %1196 = vmatprep.subr.mxu0 0.0
    %1197 = vmatpush2.msra.mxu0 0.0
    %1198 = vmatprep.subr.mxu0 0.0
    %1199 = vmatpush2.msra.mxu0 0.0
    %1200 = vmatprep.subr.mxu0 0.0
    %1201 = vmatpush2.msra.mxu0 0.0
    %1202 = vmatprep.subr.mxu0 0.0
    %1203 = vmatpush2.msra.mxu0 0.0
    %1204 = vmatprep.subr.mxu0 0.0
    %1205 = vmatpush2.msra.mxu0 0.0
    %1206 = vmatprep.subr.mxu0 0.0
    %1207 = vmatpush2.msra.mxu0 0.0
    %1208 = vmatprep.subr.mxu0 0.0
    %1209 = vmatpush2.msra.mxu0 0.0
    %1210 = vmatprep.subr.mxu0 0.0
    %1211 = vmatpush2.msra.mxu0 0.0
    %1212 = vmatprep.subr.mxu0 0.0
    %1213 = vmatpush2.msra.mxu0 0.0
    %1214 = vmatprep.subr.mxu0 0.0
    %1215 = vmatpush2.msra.mxu0 0.0
    %1216 = vmatprep.subr.mxu0 0.0
    %1217 = vmatpush2.msra.mxu0 0.0
    %1218 = vmatprep.subr.mxu0 0.0
    %1219 = vmatpush2.msra.mxu0 0.0
    %1220 = vmatprep.subr.mxu0 0.0
    %1221 = vmatpush2.msra.mxu0 0.0
    %1222 = vmatprep.mubr.f32.mxu0 0.0
    %1223 = vmatmul.mubr.f32.gmra.mxu0 %v1153
    %v1224 = vpop.f32.mrf.mxu0
    %v1225 = vadd.f32 0.0, %v1224
    %v1226 = vpop.f32.mrf.mxu0
    %1227 = vdwg.mxu0
    %v1228 = vsel %vm338, %v1225, %v41
    %v1229 = vsel %vm1137, %v1228, 1.0
    %v1230 = vld [vmem:[#allocation2 + $0x60] sm:$0xff]
    %v1231 = vld [vmem:[#allocation2 + $0x68] sm:$0xff]
    %v1232 = vld [vmem:[#allocation2 + $0x70] sm:$0xff]
    %v1233 = vld [vmem:[#allocation2 + $0x78] sm:$0xff]
    %v1234 = vld [vmem:[#allocation2 + $0x80] sm:$0xff]
    %v1235 = vld [vmem:[#allocation2 + $0x88] sm:$0xff]
    %v1236 = vld [vmem:[#allocation2 + $0x90] sm:$0xff]
    %v1237 = vld [vmem:[#allocation2 + $0x98] sm:$0xff]
    %v1238 = vld [vmem:[#allocation2 + $0xa0] sm:$0x1]
    %vm1239 = vcmask 531456
    %v1241 = vsel %vm1239, %v1229, 0
    %v1244 = vsel %vm170, %v1238, 0
    %1246 = vmatprep.subr.mxu0 0.0
    %1247 = vmatpush1.msra.mxu0 0.0
    %1248 = vmatprep.subr.mxu0 0.0
    %1249 = vmatpush1.msra.mxu0 0.0
    %1250 = vmatprep.subr.mxu0 0.0
    %1251 = vmatpush1.msra.mxu0 0.0
    %1252 = vmatprep.subr.mxu0 0.0
    %1253 = vmatpush1.msra.mxu0 0.0
    %1254 = vmatprep.subr.mxu0 0.0
    %1255 = vmatpush1.msra.mxu0 0.0
    %1256 = vmatprep.subr.mxu0 0.0
    %1257 = vmatpush1.msra.mxu0 0.0
    %1258 = vmatprep.subr.mxu0 0.0
    %1259 = vmatpush1.msra.mxu0 0.0
    %1260 = vmatprep.subr.mxu0 0.0
    %1261 = vmatpush1.msra.mxu0 %v1244
    %1262 = vmatprep.subr.mxu0 0.0
    %1263 = vmatpush1.msra.mxu0 %v1237
    %1264 = vmatprep.subr.mxu0 0.0
    %1265 = vmatpush1.msra.mxu0 %v1236
    %1266 = vmatprep.subr.mxu0 0.0
    %1267 = vmatpush1.msra.mxu0 %v1235
    %1268 = vmatprep.subr.mxu0 0.0
    %1269 = vmatpush1.msra.mxu0 %v1234
    %1270 = vmatprep.subr.mxu0 0.0
    %1271 = vmatpush1.msra.mxu0 %v1233
    %1272 = vmatprep.subr.mxu0 0.0
    %1273 = vmatpush1.msra.mxu0 %v1232
    %1274 = vmatprep.subr.mxu0 0.0
    %1275 = vmatpush1.msra.mxu0 %v1231
    %1276 = vmatprep.subr.mxu0 0.0
    %1277 = vmatpush1.msra.mxu0 %v1230
    %1278 = vmatprep.subr.mxu0 0.0
    %1279 = vmatpush2.msra.mxu0 0.0
    %1280 = vmatprep.subr.mxu0 0.0
    %1281 = vmatpush2.msra.mxu0 0.0
    %1282 = vmatprep.subr.mxu0 0.0
    %1283 = vmatpush2.msra.mxu0 0.0
    %1284 = vmatprep.subr.mxu0 0.0
    %1285 = vmatpush2.msra.mxu0 0.0
    %1286 = vmatprep.subr.mxu0 0.0
    %1287 = vmatpush2.msra.mxu0 0.0
    %1288 = vmatprep.subr.mxu0 0.0
    %1289 = vmatpush2.msra.mxu0 0.0
    %1290 = vmatprep.subr.mxu0 0.0
    %1291 = vmatpush2.msra.mxu0 0.0
    %1292 = vmatprep.subr.mxu0 0.0
    %1293 = vmatpush2.msra.mxu0 0.0
    %1294 = vmatprep.subr.mxu0 0.0
    %1295 = vmatpush2.msra.mxu0 0.0
    %1296 = vmatprep.subr.mxu0 0.0
    %1297 = vmatpush2.msra.mxu0 0.0
    %1298 = vmatprep.subr.mxu0 0.0
    %1299 = vmatpush2.msra.mxu0 0.0
    %1300 = vmatprep.subr.mxu0 0.0
    %1301 = vmatpush2.msra.mxu0 0.0
    %1302 = vmatprep.subr.mxu0 0.0
    %1303 = vmatpush2.msra.mxu0 0.0
    %1304 = vmatprep.subr.mxu0 0.0
    %1305 = vmatpush2.msra.mxu0 0.0
    %1306 = vmatprep.subr.mxu0 0.0
    %1307 = vmatpush2.msra.mxu0 0.0
    %1308 = vmatprep.subr.mxu0 0.0
    %1309 = vmatpush2.msra.mxu0 0.0
    %1310 = vmatprep.mubr.f32.mxu0 0.0
    %1311 = vmatmul.mubr.f32.gmra.mxu0 %v1241
    %v1312 = vpop.f32.mrf.mxu0
    %v1313 = vadd.f32 0.0, %v1312
    %v1314 = vpop.f32.mrf.mxu0
    %1315 = vdwg.mxu0
    %v1316 = vxor.u32 %v1313, 2147483648
    %v1317 = vmul.f32 %v1316, 1.442695
    %v1318 = vpow.pop %v1317
    %v1319 = vadd.f32 %v1318, 1.0
    %v1320 = vrcp.pop %v1319
    %v1321 = vmul.f32 1.0, %v1320
    %v1322 = vtanh.pop %v1313
    %1323 = vrot.lane.b32.xlu0 %v322, 64
    %v1324 = vpop.permute.xlu0 %1323
    %v1326 = vmul.f32 %v1321, %v1324
    %1328 = vrot.lane.b32.xlu0 %v1322, 64
    %v1329 = vpop.permute.xlu0 %1328
    %v1331 = vmul.f32 %v1321, %v1329
    %1333 = vrot.lane.b32.xlu0 %v1331, 32
    %v1334 = vpop.permute.xlu0 %1333
    %v1336 = vadd.f32 %v1326, %v1334
    %v1337 = vtanh.pop %v1336
    %1339 = vrot.lane.b32.xlu0 %v1337, 64
    %v1340 = vpop.permute.xlu0 %1339
    %v1342 = vmul.f32 %v1321, %v1340
    %1344 = vrot.lane.b32.xlu0 %v1342, 32
    %v1345 = vpop.permute.xlu0 %1344
    %v1347 = vadd.f32 %v1225, %v1345
    %1348 = vrot.lane.b32.xlu0 %v322, 96
    %v1349 = vpop.permute.xlu0 %1348
    %v1351 = vsel %vm338, %v1347, %v1349
    %v1352 = vsel %vm1137, %v1351, 1.0
    %v1353 = vld [vmem:[#allocation2 + $0xa8] sm:$0xff]
    %v1354 = vld [vmem:[#allocation2 + $0xb0] sm:$0xff]
    %v1355 = vld [vmem:[#allocation2 + $0xb8] sm:$0xff]
    %v1356 = vld [vmem:[#allocation2 + $0xc0] sm:$0xff]
    %v1357 = vld [vmem:[#allocation2 + $0xc8] sm:$0xff]
    %v1358 = vld [vmem:[#allocation2 + $0xd0] sm:$0xff]
    %v1359 = vld [vmem:[#allocation2 + $0xd8] sm:$0xff]
    %v1360 = vld [vmem:[#allocation2 + $0xe0] sm:$0xff]
    %v1361 = vld [vmem:[#allocation2 + $0xe8] sm:$0x1]
    %v1363 = vsel %vm1239, %v1352, 0
    %v1366 = vsel %vm170, %v1361, 0
    %1368 = vmatprep.subr.mxu0 0.0
    %1369 = vmatpush1.msra.mxu0 0.0
    %1370 = vmatprep.subr.mxu0 0.0
    %1371 = vmatpush1.msra.mxu0 0.0
    %1372 = vmatprep.subr.mxu0 0.0
    %1373 = vmatpush1.msra.mxu0 0.0
    %1374 = vmatprep.subr.mxu0 0.0
    %1375 = vmatpush1.msra.mxu0 0.0
    %1376 = vmatprep.subr.mxu0 0.0
    %1377 = vmatpush1.msra.mxu0 0.0
    %1378 = vmatprep.subr.mxu0 0.0
    %1379 = vmatpush1.msra.mxu0 0.0
    %1380 = vmatprep.subr.mxu0 0.0
    %1381 = vmatpush1.msra.mxu0 0.0
    %1382 = vmatprep.subr.mxu0 0.0
    %1383 = vmatpush1.msra.mxu0 %v1366
    %1384 = vmatprep.subr.mxu0 0.0
    %1385 = vmatpush1.msra.mxu0 %v1360
    %1386 = vmatprep.subr.mxu0 0.0
    %1387 = vmatpush1.msra.mxu0 %v1359
    %1388 = vmatprep.subr.mxu0 0.0
    %1389 = vmatpush1.msra.mxu0 %v1358
    %1390 = vmatprep.subr.mxu0 0.0
    %1391 = vmatpush1.msra.mxu0 %v1357
    %1392 = vmatprep.subr.mxu0 0.0
    %1393 = vmatpush1.msra.mxu0 %v1356
    %1394 = vmatprep.subr.mxu0 0.0
    %1395 = vmatpush1.msra.mxu0 %v1355
    %1396 = vmatprep.subr.mxu0 0.0
    %1397 = vmatpush1.msra.mxu0 %v1354
    %1398 = vmatprep.subr.mxu0 0.0
    %1399 = vmatpush1.msra.mxu0 %v1353
    %1400 = vmatprep.subr.mxu0 0.0
    %1401 = vmatpush2.msra.mxu0 0.0
    %1402 = vmatprep.subr.mxu0 0.0
    %1403 = vmatpush2.msra.mxu0 0.0
    %1404 = vmatprep.subr.mxu0 0.0
    %1405 = vmatpush2.msra.mxu0 0.0
    %1406 = vmatprep.subr.mxu0 0.0
    %1407 = vmatpush2.msra.mxu0 0.0
    %1408 = vmatprep.subr.mxu0 0.0
    %1409 = vmatpush2.msra.mxu0 0.0
    %1410 = vmatprep.subr.mxu0 0.0
    %1411 = vmatpush2.msra.mxu0 0.0
    %1412 = vmatprep.subr.mxu0 0.0
    %1413 = vmatpush2.msra.mxu0 0.0
    %1414 = vmatprep.subr.mxu0 0.0
    %1415 = vmatpush2.msra.mxu0 0.0
    %1416 = vmatprep.subr.mxu0 0.0
    %1417 = vmatpush2.msra.mxu0 0.0
    %1418 = vmatprep.subr.mxu0 0.0
    %1419 = vmatpush2.msra.mxu0 0.0
    %1420 = vmatprep.subr.mxu0 0.0
    %1421 = vmatpush2.msra.mxu0 0.0
    %1422 = vmatprep.subr.mxu0 0.0
    %1423 = vmatpush2.msra.mxu0 0.0
    %1424 = vmatprep.subr.mxu0 0.0
    %1425 = vmatpush2.msra.mxu0 0.0
    %1426 = vmatprep.subr.mxu0 0.0
    %1427 = vmatpush2.msra.mxu0 0.0
    %1428 = vmatprep.subr.mxu0 0.0
    %1429 = vmatpush2.msra.mxu0 0.0
    %1430 = vmatprep.subr.mxu0 0.0
    %1431 = vmatpush2.msra.mxu0 0.0
    %1432 = vmatprep.mubr.f32.mxu0 0.0
    %1433 = vmatmul.mubr.f32.gmra.mxu0 %v1363
    %v1434 = vpop.f32.mrf.mxu0
    %v1435 = vadd.f32 0.0, %v1434
    %v1436 = vpop.f32.mrf.mxu0
    %1437 = vdwg.mxu0
    %v1438 = vxor.u32 %v1435, 2147483648
    %v1439 = vmul.f32 %v1438, 1.442695
    %v1440 = vpow.pop %v1439
    %v1441 = vadd.f32 %v1440, 1.0
    %v1442 = vrcp.pop %v1441
    %v1443 = vmul.f32 1.0, %v1442
    %v1444 = vtanh.pop %v1435
    %1445 = vrot.lane.b32.xlu0 %v323, 32
    %v1446 = vpop.permute.xlu0 %1445
    %v1448 = vmul.f32 %v1443, %v1446
    %1450 = vrot.lane.b32.xlu0 %v1444, 64
    %v1451 = vpop.permute.xlu0 %1450
    %v1453 = vmul.f32 %v1443, %v1451
    %1455 = vrot.lane.b32.xlu0 %v1453, 32
    %v1456 = vpop.permute.xlu0 %1455
    %v1458 = vadd.f32 %v1448, %v1456
    %v1459 = vtanh.pop %v1458
    %1461 = vrot.lane.b32.xlu0 %v1459, 64
    %v1462 = vpop.permute.xlu0 %1461
    %v1464 = vmul.f32 %v1443, %v1462
    %1466 = vrot.lane.b32.xlu0 %v1464, 32
    %v1467 = vpop.permute.xlu0 %1466
    %v1469 = vadd.f32 %v1347, %v1467
    %v1470 = vld [vmem:[#allocation2 + $0x140] sm:$0xff]
    %v1471 = vld [vmem:[#allocation2 + $0x148] sm:$0xff]
    %v1472 = vld [vmem:[#allocation2 + $0x150] sm:$0xff]
    %v1473 = vld [vmem:[#allocation2 + $0x158] sm:$0xff]
    %v1475 = vsel %vm338, %v1469, 0
    %1477 = vmatprep.subr.mxu0 0.0
    %1478 = vmatpush1.msra.mxu0 0.0
    %1479 = vmatprep.subr.mxu0 0.0
    %1480 = vmatpush1.msra.mxu0 0.0
    %1481 = vmatprep.subr.mxu0 0.0
    %1482 = vmatpush1.msra.mxu0 0.0
    %1483 = vmatprep.subr.mxu0 0.0
    %1484 = vmatpush1.msra.mxu0 0.0
    %1485 = vmatprep.subr.mxu0 0.0
    %1486 = vmatpush1.msra.mxu0 0.0
    %1487 = vmatprep.subr.mxu0 0.0
    %1488 = vmatpush1.msra.mxu0 0.0
    %1489 = vmatprep.subr.mxu0 0.0
    %1490 = vmatpush1.msra.mxu0 0.0
    %1491 = vmatprep.subr.mxu0 0.0
    %1492 = vmatpush1.msra.mxu0 0.0
    %1493 = vmatprep.subr.mxu0 0.0
    %1494 = vmatpush1.msra.mxu0 0.0
    %1495 = vmatprep.subr.mxu0 0.0
    %1496 = vmatpush1.msra.mxu0 0.0
    %1497 = vmatprep.subr.mxu0 0.0
    %1498 = vmatpush1.msra.mxu0 0.0
    %1499 = vmatprep.subr.mxu0 0.0
    %1500 = vmatpush1.msra.mxu0 0.0
    %1501 = vmatprep.subr.mxu0 0.0
    %1502 = vmatpush1.msra.mxu0 %v1473
    %1503 = vmatprep.subr.mxu0 0.0
    %1504 = vmatpush1.msra.mxu0 %v1472
    %1505 = vmatprep.subr.mxu0 0.0
    %1506 = vmatpush1.msra.mxu0 %v1471
    %1507 = vmatprep.subr.mxu0 0.0
    %1508 = vmatpush1.msra.mxu0 %v1470
    %1509 = vmatprep.subr.mxu0 0.0
    %1510 = vmatpush2.msra.mxu0 0.0
    %1511 = vmatprep.subr.mxu0 0.0
    %1512 = vmatpush2.msra.mxu0 0.0
    %1513 = vmatprep.subr.mxu0 0.0
    %1514 = vmatpush2.msra.mxu0 0.0
    %1515 = vmatprep.subr.mxu0 0.0
    %1516 = vmatpush2.msra.mxu0 0.0
    %1517 = vmatprep.subr.mxu0 0.0
    %1518 = vmatpush2.msra.mxu0 0.0
    %1519 = vmatprep.subr.mxu0 0.0
    %1520 = vmatpush2.msra.mxu0 0.0
    %1521 = vmatprep.subr.mxu0 0.0
    %1522 = vmatpush2.msra.mxu0 0.0
    %1523 = vmatprep.subr.mxu0 0.0
    %1524 = vmatpush2.msra.mxu0 0.0
    %1525 = vmatprep.subr.mxu0 0.0
    %1526 = vmatpush2.msra.mxu0 0.0
    %1527 = vmatprep.subr.mxu0 0.0
    %1528 = vmatpush2.msra.mxu0 0.0
    %1529 = vmatprep.subr.mxu0 0.0
    %1530 = vmatpush2.msra.mxu0 0.0
    %1531 = vmatprep.subr.mxu0 0.0
    %1532 = vmatpush2.msra.mxu0 0.0
    %1533 = vmatprep.subr.mxu0 0.0
    %1534 = vmatpush2.msra.mxu0 0.0
    %1535 = vmatprep.subr.mxu0 0.0
    %1536 = vmatpush2.msra.mxu0 0.0
    %1537 = vmatprep.subr.mxu0 0.0
    %1538 = vmatpush2.msra.mxu0 0.0
    %1539 = vmatprep.subr.mxu0 0.0
    %1540 = vmatpush2.msra.mxu0 0.0
    %1541 = vmatprep.mubr.f32.mxu0 0.0
    %1542 = vmatmul.mubr.f32.gmra.mxu0 %v1475
    %v1543 = vpop.f32.mrf.mxu0
    %v1544 = vadd.f32 0.0, %v1543
    %v1545 = vpop.f32.mrf.mxu0
    %1546 = vdwg.mxu0
    %1547 = vrot.lane.b32.xlu0 %v1342, 64
    %v1548 = vpop.permute.xlu0 %1547
    %1550 = vrot.lane.b32.xlu0 %v1464, 96
    %v1551 = vpop.permute.xlu0 %1550
    %1554 = vrot.lane.b32.xlu0 %v1336, 64
    %v1555 = vpop.permute.xlu0 %1554
    %1558 = vrot.lane.b32.xlu0 %v1458, 96
    %v1559 = vpop.permute.xlu0 %1558
    %1561 = vrot.lane.b32.xlu0 %v1131, 32
    %v1562 = vpop.permute.xlu0 %1561
    %v1566 = vunpack.c.l.s4 1983009808
    %v1567 = vunpack.c.0.s8 %v1566
    %v1568 = vlaneseq
    %v1569 = vshrl.u32 %v1568, 7
    %v1570 = vsub.s32 %v1567, %v1569
    %v1571 = vrot.slane %v1079, %v1570
    %1572 = vrot.lane.b32.xlu0 %v1571, 64
    %v1573 = vpop.permute.xlu0 %1572
    %1577 = vrot.lane.b32.xlu0 %v1544, 96
    %v1578 = vpop.permute.xlu0 %1577
    %v1582 = vunpack.c.l.s4 1983009808
    %v1583 = vunpack.c.0.s8 %v1582
    %v1584 = vlaneseq
    %v1585 = vshrl.u32 %v1584, 7
    %v1586 = vsub.s32 %v1583, %v1585
    %v1587 = vrot.slane %v1074, %v1586
    %1588 = vrot.lane.b32.xlu0 %v1587, 48
    %v1589 = vpop.permute.xlu0 %1588
    %v1591 = vsel %vm338, %v482, %v1548
    %v1592 = vsel %vm1137, %v1591, %v1551
    %vm1593 = vcmask 785408
    %v1594 = vsel %vm1593, %v1592, %v1555
    %v1595 = vsel %vm338, %v1559, %v1562
    %v1596 = vsel %vm1137, %v1595, %v1573
    %vm1597 = vcmask 654336
    %v1598 = vsel %vm1597, %v1596, %v323
    %v1599 = vsel %vm1593, %v1598, %v1578
    %v1600 = vsel %vm340, %v1578, %v1589
    %v1601 = vsel %vm1137, %v1600, 0.0
    %v1605 = vcombine.low %v1594, %v1599
    %v1607 = vunpack.c.l.s4 1983009808
    %v1608 = vunpack.c.0.s8 %v1607
    %v1609 = vlaneseq
    %v1610 = vshrl.u32 %v1609, 7
    %v1611 = vsub.s32 %v1608, %v1610
    %v1612 = vrot.slane %v1605, %v1611
    %v1614 = vunpack.c.l.s4 1983009808
    %v1615 = vunpack.c.0.s8 %v1614
    %v1616 = vlaneseq
    %v1617 = vshrl.u32 %v1616, 7
    %v1618 = vsub.s32 %v1615, %v1617
    %v1619 = vrot.slane %v1601, %v1618
    %v1620 = vcombine.low %v1612, %v1619
    %1622 = vst [vmem:[#allocation5] sm:$0x3f] %v1620
    // Predicated region
    $region34: #{decoder_step.1} parent=1 // pred_check
      _
    $region35: #{decoder_step.1} parent=1 // pred_check_branch
      %1624 = sbr.rel (0) target = $region37
    $region36: #{decoder_step.1} parent=1 // pred_region
      %s1626 = ssub.s32 96, 96
      %1627 = vsyncadd [#allocation4], %s1626
      %s1629 = sshll.u32 [#allocation5], 4
      %s1630 = int_to_ptr.vmem [resolvable:$true] %s1629
      %1632 = dma.vmem_to_hbm [thread:$0]  %s1630, 96, %s7, [#allocation4]
    $region37: #{decoder_step.1} parent=1 // pred_fallthru
      _
    // Predicated region
    $region38: #{decoder_step.1} parent=1 // pred_check
      _
    $region39: #{decoder_step.1} parent=1 // pred_check_branch
      %1634 = sbr.rel (0) target = $region41
    $region40: #{decoder_step.1} parent=1 // pred_region
      %1635 = dma.done [#allocation4], 96
    $region41: #{decoder_step.1} parent=1 // pred_fallthru
      _
    %1636 = vsyncpa [#allocation3], 1
    %1637 = vsyncpa [#allocation4], 1

</llo_original>
